<compile_context>
chip_gen: v5e
topology: v5e:2x2
jax: 0.10.0
libtpu: 0.0.40
codegen_flags: <defaults>
</compile_context>

<pallas_src>
import functools

import jax
import jax.numpy as jnp
from jax import lax
from jax.experimental import pallas as pl
from jax.experimental.pallas import tpu as pltpu

DT = 0.05
TAU = 0.15
G0 = 1.2


def _round_up(x, m):
    return -(-x // m) * m


def _pallidal_block_kernel(a, one_minus_a, block_t, n,
                           x0_ref, u_ref, i_ref, wcat_ref, uw_ref,   # inputs
                           x_out_ref, r_out_ref,                     # outputs
                           x_sc, r_sc):                              # VMEM carries
    """block_t Euler steps of the pallidal-thalamo-cortical loop per grid iteration.

    Weights (i_ref, wcat_ref, uw_ref) are VMEM-resident (constant index_map,
    single-buffered); the cortical state x and its rate r = tanh(x) are carried in
    VMEM scratch across grid iterations, so tanh is computed exactly once per step.
    """
    g = pl.program_id(0)
    mm_dtype = wcat_ref.dtype

    @pl.when(g == 0)
    def _():
        x_sc[...] = x0_ref[...]
        r_sc[...] = jnp.tanh(x0_ref[...]).astype(mm_dtype)

    # Resident weights (loaded once per grid iteration; regalloc/spill handled by Mosaic).
    i_w = i_ref[...]        # (Din_pad, N)  input weights with bias folded in
    w_cat = wcat_ref[...]   # (N, 3N)       fused J | Wb | Vt
    u_w = uw_ref[...]       # (N, N)        thalamo-cortical feedback

    def step(s, carry):
        x, r = carry
        # external drive (inputs already carry a ones-column, so this includes the bias)
        ext = jnp.dot(u_ref[s], i_w, preferred_element_type=jnp.float32)       # (B, N)
        # one fused MXU push for the three r-driven projections: (B, N) @ (N, 3N)
        fused = jnp.dot(r, w_cat, preferred_element_type=jnp.float32)          # (B, 3N)
        rec = fused[:, :n]                                                     # cortical recurrence
        bg = jnp.maximum(fused[:, n:2 * n], 0.0)                               # pallidal population
        thal = jnp.maximum(fused[:, 2 * n:] - bg, 0.0)                         # thalamus (BG-inhibited)
        # thalamo-cortical feedback
        tc = jnp.dot(thal.astype(mm_dtype), u_w, preferred_element_type=jnp.float32)
        # folded leak: x + a*(-x + ...) == (1-a)*x + a*(...)
        x_new = one_minus_a * x + a * (rec + tc + ext)
        r_new = jnp.tanh(x_new)
        x_out_ref[s] = x_new            # r_hidden
        r_out_ref[s] = r_new            # r_act
        return x_new, r_new.astype(mm_dtype)

    x_fin, r_fin = lax.fori_loop(0, block_t, step, (x_sc[...], r_sc[...]), unroll=True)
    x_sc[...] = x_fin
    r_sc[...] = r_fin


def pallidal_rnn_rollout(x0, rnn_input_seqs, params, *,
                         matmul_dtype=jnp.bfloat16, block_t=8):
    """Run T fused Euler steps. x0: (B, N); rnn_input_seqs: {name: (T, B, d)}.

    Returns {'r_hidden': (T, B, N), 'r_act': (T, B, N)} where each step matches
    PallidalRNN.forward semantics.
    """
    keys = sorted(rnn_input_seqs.keys())
    u_cat = jnp.concatenate([rnn_input_seqs[k] for k in keys], axis=-1)   # (T, B, Din)
    i_cat = jnp.concatenate([params["I"][k] for k in keys], axis=0)       # (Din, N)
    t_steps, batch, din = u_cat.shape
    n = x0.shape[-1]

    # Fold the cortical bias into the input projection via a ones-column / extra weight row.
    u_aug = jnp.concatenate([u_cat, jnp.ones((t_steps, batch, 1), u_cat.dtype)], axis=-1)
    i_aug = jnp.concatenate([i_cat, params["B"]], axis=0)                 # (Din+1, N)
    din_aug = din + 1

    # --- padding to TPU-friendly shapes (zero padding is dynamically inert) ---
    n_pad = _round_up(n, 128)          # lane-aligned slices of the fused (B, 3N) result
    b_pad = _round_up(max(batch, 1), 16)   # full (16,128) bf16 vregs on the LHS
    d_pad = _round_up(din_aug, 8)
    tt = max(1, min(block_t, t_steps))
    t_pad = _round_up(t_steps, tt)

    u_aug = jnp.pad(u_aug, ((0, t_pad - t_steps), (0, b_pad - batch), (0, d_pad - din_aug)))
    i_aug = jnp.pad(i_aug, ((0, d_pad - din_aug), (0, n_pad - n)))
    x0_p = jnp.pad(x0, ((0, b_pad - batch), (0, n_pad - n)))

    def _pad_w(w):
        return jnp.pad(w, ((0, n_pad - n), (0, n_pad - n)))

    # Fuse J / Wb / Vt along the output axis; cast weights + streamed inputs to bf16.
    w_cat = jnp.concatenate(
        [_pad_w(params["J"]), _pad_w(params["Wb"]), _pad_w(params["Vt"])],
        axis=1).astype(matmul_dtype)                                      # (N, 3N)
    u_w = _pad_w(params["U"]).astype(matmul_dtype)                        # (N, N)
    i_aug = i_aug.astype(matmul_dtype)
    u_aug = u_aug.astype(matmul_dtype)                                    # streamed in bf16

    a = DT / TAU
    kernel = functools.partial(_pallidal_block_kernel, a, 1.0 - a, tt, n_pad)

    # VMEM budget: resident weights single-buffered, streamed blocks double-buffered.
    resident = 2 * (n_pad * 3 * n_pad + n_pad * n_pad + d_pad * n_pad) + 4 * b_pad * n_pad
    streamed = 2 * (tt * b_pad * max(d_pad, 128) * 2) + 2 * 2 * (tt * b_pad * n_pad * 4)
    scratch = b_pad * n_pad * (4 + 2)
    vmem_limit = int(min(max(2 * (resident + streamed + scratch) + (8 << 20), 32 << 20),
                         100 << 20))

    grid_t = t_pad // tt

    x_seq, r_seq = pl.pallas_call(
        kernel,
        grid=(grid_t,),
        in_specs=[
            # x0: read only at g==0; resident, single-buffered.
            pl.BlockSpec((b_pad, n_pad), lambda t: (0, 0), pipeline_mode=pl.Buffered(1)),
            # streamed raw inputs: one (TT, B, Din) slab per grid step (double-buffered).
            pl.BlockSpec((tt, b_pad, d_pad), lambda t: (t, 0, 0)),
            # input weights (+bias row): resident, single-buffered.
            pl.BlockSpec((d_pad, n_pad), lambda t: (0, 0), pipeline_mode=pl.Buffered(1)),
            # fused J|Wb|Vt: resident, single-buffered.
            pl.BlockSpec((n_pad, 3 * n_pad), lambda t: (0, 0), pipeline_mode=pl.Buffered(1)),
            # U: resident, single-buffered.
            pl.BlockSpec((n_pad, n_pad), lambda t: (0, 0), pipeline_mode=pl.Buffered(1)),
        ],
        out_specs=(
            pl.BlockSpec((tt, b_pad, n_pad), lambda t: (t, 0, 0)),
            pl.BlockSpec((tt, b_pad, n_pad), lambda t: (t, 0, 0)),
        ),
        out_shape=(
            jax.ShapeDtypeStruct((t_pad, b_pad, n_pad), jnp.float32),
            jax.ShapeDtypeStruct((t_pad, b_pad, n_pad), jnp.float32),
        ),
        scratch_shapes=[
            pltpu.VMEM((b_pad, n_pad), jnp.float32),    # carried x
            pltpu.VMEM((b_pad, n_pad), matmul_dtype),   # carried r = tanh(x), bf16
        ],
        compiler_params=pltpu.CompilerParams(
            dimension_semantics=("arbitrary",),         # recurrent time axis is serial
            vmem_limit_bytes=vmem_limit),
    )(x0_p, u_aug, i_aug, w_cat, u_w)

    return {"r_hidden": x_seq[:t_steps, :batch, :n],
            "r_act": r_seq[:t_steps, :batch, :n]}


def pallidal_rnn_forward(x, rnn_inputs, params):
    """Single-step forward matching PallidalRNN.forward (T=1 rollout)."""
    seqs = {k: v[None] for k, v in rnn_inputs.items()}
    out = pallidal_rnn_rollout(x, seqs, params)
    return {"r_hidden": out["r_hidden"][0], "r_act": out["r_act"][0]}


def _reference_rollout(x0, rnn_input_seqs, params, matmul_dtype=jnp.bfloat16):
    """Pure-JAX reference (same bf16-weight / f32-accumulate / folded-leak recipe)."""
    keys = sorted(rnn_input_seqs.keys())
    u_cat = jnp.concatenate([rnn_input_seqs[k] for k in keys], axis=-1)
    i_cat = jnp.concatenate([params["I"][k] for k in keys], axis=0)
    t_steps, batch, _ = u_cat.shape
    u_aug = jnp.concatenate([u_cat, jnp.ones((t_steps, batch, 1), u_cat.dtype)], axis=-1)
    i_aug = jnp.concatenate([i_cat, params["B"]], axis=0)
    ext_all = jnp.einsum("tbd,dn->tbn",
                         u_aug.astype(matmul_dtype), i_aug.astype(matmul_dtype),
                         preferred_element_type=jnp.float32)
    j = params["J"].astype(matmul_dtype)
    wb = params["Wb"].astype(matmul_dtype)
    vt = params["Vt"].astype(matmul_dtype)
    u_w = params["U"].astype(matmul_dtype)
    a = DT / TAU

    def step(x, ext):
        r = jnp.tanh(x).astype(matmul_dtype)
        rec = jnp.dot(r, j, preferred_element_type=jnp.float32)
        bg = jnp.maximum(jnp.dot(r, wb, preferred_element_type=jnp.float32), 0.0)
        thal = jnp.maximum(jnp.dot(r, vt, preferred_element_type=jnp.float32) - bg, 0.0)
        tc = jnp.dot(thal.astype(matmul_dtype), u_w, preferred_element_type=jnp.float32)
        x_new = (1.0 - a) * x + a * (rec + tc + ext)
        return x_new, (x_new, jnp.tanh(x_new))

    _, (xs, rs) = jax.lax.scan(step, x0, ext_all)
    return {"r_hidden": xs, "r_act": rs}


def init_params(key, nneurons, input_sources):
    """Deterministic synthetic initialization (shapes follow BGRNN parameter names)."""
    ks = jax.random.split(key, 8)
    n = nneurons
    scale = G0 / jnp.sqrt(n)
    params = {
        "J": scale * jax.random.normal(ks[0], (n, n), jnp.float32),   # cortical recurrence
        "Wb": scale * jax.random.normal(ks[1], (n, n), jnp.float32),  # pallidal weights
        "Vt": scale * jax.random.normal(ks[2], (n, n), jnp.float32),  # cortico-thalamic
        "U": scale * jax.random.normal(ks[3], (n, n), jnp.float32),   # thalamo-cortical
        "B": 0.1 * jax.random.normal(ks[4], (1, n), jnp.float32),     # cortical bias
        "I": {},                                                      # per-source input weights
    }
    for idx, (name, (dim, _trainable)) in enumerate(sorted(input_sources.items())):
        params["I"][name] = (1.0 / jnp.sqrt(dim)) * jax.random.normal(
            ks[5 + idx], (dim, n), jnp.float32)
    return params


if __name__ == "__main__":
    key = jax.random.PRNGKey(0)
    batch = 4
    nneurons = 128
    t_steps = 16            # two time-blocks of TT=8 steps -> exercises carried state
    input_sources = {"context": (8, True), "go_cue": (8, False)}

    k_p, k_x, k_c, k_g = jax.random.split(key, 4)
    params = init_params(k_p, nneurons, input_sources)

    x0 = 0.1 * jax.random.normal(k_x, (batch, nneurons), jnp.float32)
    input_seqs = {
        "context": jax.random.normal(k_c, (t_steps, batch, 8), jnp.float32),
        "go_cue": jax.random.normal(k_g, (t_steps, batch, 8), jnp.float32),
    }

    # Multi-step rollout (time loop fused inside the kernel, 8 steps per grid iter).
    out = pallidal_rnn_rollout(x0, input_seqs, params, block_t=8)
    jax.block_until_ready(out)
    assert out["r_hidden"].shape == (t_steps, batch, nneurons)
    assert out["r_act"].shape == (t_steps, batch, nneurons)
    assert bool(jnp.all(jnp.isfinite(out["r_hidden"])))
    assert bool(jnp.all(jnp.isfinite(out["r_act"])))

    # Check against a pure-JAX reference using the same bf16/f32 recipe.
    ref = _reference_rollout(x0, input_seqs, params)
    assert bool(jnp.allclose(out["r_hidden"], ref["r_hidden"], atol=1e-2, rtol=1e-2))
    assert bool(jnp.allclose(out["r_act"], ref["r_act"], atol=1e-2, rtol=1e-2))

    # Single-step forward (module-level PallidalRNN.forward semantics).
    step_out = pallidal_rnn_forward(
        x0, {k: v[0] for k, v in input_seqs.items()}, params)
    jax.block_until_ready(step_out)
    assert step_out["r_hidden"].shape == (batch, nneurons)
    assert step_out["r_act"].shape == (batch, nneurons)

    print("KERNEL_OK")
</pallas_src>

<mosaic_0001>
module attributes {stable_mosaic.version = 11 : i64} {
  func.func @_pallidal_block_kernel(%arg0: i32, %arg1: memref<16x128xf32, #tpu.memory_space<vmem>>, %arg2: memref<8x16x24xbf16, #tpu.memory_space<vmem>>, %arg3: memref<24x128xbf16, #tpu.memory_space<vmem>>, %arg4: memref<128x384xbf16, #tpu.memory_space<vmem>>, %arg5: memref<128x128xbf16, #tpu.memory_space<vmem>>, %arg6: memref<8x16x128xf32, #tpu.memory_space<vmem>>, %arg7: memref<8x16x128xf32, #tpu.memory_space<vmem>>, %arg8: memref<16x128xf32, #tpu.memory_space<vmem>>, %arg9: memref<16x128xbf16, #tpu.memory_space<vmem>>) attributes {dimension_semantics = [#tpu.dimension_semantics<arbitrary>], iteration_bounds = array<i64: 2>, scalar_prefetch = 0 : i64, scratch_operands = 2 : i64, tpu.core_type = #tpu.core_type<tc>, window_params = [{pipeline_mode = #tpu.pipeline_mode<synchronous>, transform_indices = @transform_0, window_bounds = array<i64: 16, 128>}, {transform_indices = @transform_1, window_bounds = array<i64: 8, 16, 24>}, {pipeline_mode = #tpu.pipeline_mode<synchronous>, transform_indices = @transform_2, window_bounds = array<i64: 24, 128>}, {pipeline_mode = #tpu.pipeline_mode<synchronous>, transform_indices = @transform_3, window_bounds = array<i64: 128, 384>}, {pipeline_mode = #tpu.pipeline_mode<synchronous>, transform_indices = @transform_4, window_bounds = array<i64: 128, 128>}, {transform_indices = @transform_5, window_bounds = array<i64: 8, 16, 128>}, {transform_indices = @transform_6, window_bounds = array<i64: 8, 16, 128>}]} {
    %c0_i32 = arith.constant 0 : i32
    %0 = arith.cmpi eq, %arg0, %c0_i32 : i32
    %1 = arith.extui %0 : i1 to i32
    %c0_i32_0 = arith.constant 0 : i32
    %2 = arith.cmpi ne, %1, %c0_i32_0 : i32
    scf.if %2 {
      %c0_118 = arith.constant 0 : index
      %c0_119 = arith.constant 0 : index
      %266 = vector.load %arg1[%c0_118, %c0_119] : memref<16x128xf32, #tpu.memory_space<vmem>>, vector<16x128xf32>
      %c0_120 = arith.constant 0 : index
      %c0_121 = arith.constant 0 : index
      %267 = vector.load %arg8[%c0_120, %c0_121] : memref<16x128xf32, #tpu.memory_space<vmem>>, vector<16x128xf32>
      tpu.vector_store %arg8[%c0_120, %c0_121], %266 {strides = array<i32>} : memref<16x128xf32, #tpu.memory_space<vmem>>, vector<16x128xf32>,
      %c0_122 = arith.constant 0 : index
      %c0_123 = arith.constant 0 : index
      %268 = vector.load %arg1[%c0_122, %c0_123] : memref<16x128xf32, #tpu.memory_space<vmem>>, vector<16x128xf32>
      %269 = math.tanh %268 : vector<16x128xf32>
      %270 = arith.truncf %269 : vector<16x128xf32> to vector<16x128xbf16>
      %c0_124 = arith.constant 0 : index
      %c0_125 = arith.constant 0 : index
      %271 = vector.load %arg9[%c0_124, %c0_125] : memref<16x128xbf16, #tpu.memory_space<vmem>>, vector<16x128xbf16>
      tpu.vector_store %arg9[%c0_124, %c0_125], %270 {strides = array<i32>} : memref<16x128xbf16, #tpu.memory_space<vmem>>, vector<16x128xbf16>,
    } else {
    }
    %c0 = arith.constant 0 : index
    %c0_1 = arith.constant 0 : index
    %3 = vector.load %arg3[%c0, %c0_1] : memref<24x128xbf16, #tpu.memory_space<vmem>>, vector<24x128xbf16>
    %c0_2 = arith.constant 0 : index
    %c0_3 = arith.constant 0 : index
    %4 = vector.load %arg4[%c0_2, %c0_3] : memref<128x384xbf16, #tpu.memory_space<vmem>>, vector<128x384xbf16>
    %c0_4 = arith.constant 0 : index
    %c0_5 = arith.constant 0 : index
    %5 = vector.load %arg5[%c0_4, %c0_5] : memref<128x128xbf16, #tpu.memory_space<vmem>>, vector<128x128xbf16>
    %c0_6 = arith.constant 0 : index
    %c0_7 = arith.constant 0 : index
    %6 = vector.load %arg8[%c0_6, %c0_7] : memref<16x128xf32, #tpu.memory_space<vmem>>, vector<16x128xf32>
    %c0_8 = arith.constant 0 : index
    %c0_9 = arith.constant 0 : index
    %7 = vector.load %arg9[%c0_8, %c0_9] : memref<16x128xbf16, #tpu.memory_space<vmem>>, vector<16x128xbf16>
    %c0_i32_10 = arith.constant 0 : i32
    %8 = arith.index_cast %c0_i32_10 : i32 to index
    %c0_11 = arith.constant 0 : index
    %c0_12 = arith.constant 0 : index
    %9 = vector.load %arg2[%8, %c0_11, %c0_12] : memref<8x16x24xbf16, #tpu.memory_space<vmem>>, vector<1x16x24xbf16>
    %10 = vector.shape_cast %9 : vector<1x16x24xbf16> to vector<16x24xbf16>
    %cst = arith.constant dense<0.000000e+00> : vector<16x128xf32>
    %11 = tpu.matmul %10, %3, %cst {dimension_numbers = #tpu.dot_dimension_numbers<[1], [0], [0], [1], [0, 0, 1, 1], [], []>} : vector<16x24xbf16>, vector<24x128xbf16>, vector<16x128xf32> -> vector<16x128xf32>
    %cst_13 = arith.constant dense<0.000000e+00> : vector<16x384xf32>
    %12 = tpu.matmul %7, %4, %cst_13 {dimension_numbers = #tpu.dot_dimension_numbers<[1], [0], [0], [1], [0, 0, 1, 1], [], []>} : vector<16x128xbf16>, vector<128x384xbf16>, vector<16x384xf32> -> vector<16x384xf32>
    %13 = vector.extract_strided_slice %12 {offsets = [0, 0], sizes = [16, 128], strides = [1, 1]} : vector<16x384xf32> to vector<16x128xf32>
    %14 = vector.extract_strided_slice %12 {offsets = [0, 128], sizes = [16, 128], strides = [1, 1]} : vector<16x384xf32> to vector<16x128xf32>
    %cst_14 = arith.constant 0.000000e+00 : f32
    %15 = vector.broadcast %cst_14 : f32 to vector<16x128xf32>
    %16 = arith.maximumf %14, %15 : vector<16x128xf32>
    %17 = vector.extract_strided_slice %12 {offsets = [0, 256], sizes = [16, 128], strides = [1, 1]} : vector<16x384xf32> to vector<16x128xf32>
    %18 = arith.subf %17, %16 : vector<16x128xf32>
    %cst_15 = arith.constant 0.000000e+00 : f32
    %19 = vector.broadcast %cst_15 : f32 to vector<16x128xf32>
    %20 = arith.maximumf %18, %19 : vector<16x128xf32>
    %21 = arith.truncf %20 : vector<16x128xf32> to vector<16x128xbf16>
    %cst_16 = arith.constant dense<0.000000e+00> : vector<16x128xf32>
    %22 = tpu.matmul %21, %5, %cst_16 {dimension_numbers = #tpu.dot_dimension_numbers<[1], [0], [0], [1], [0, 0, 1, 1], [], []>} : vector<16x128xbf16>, vector<128x128xbf16>, vector<16x128xf32> -> vector<16x128xf32>
    %cst_17 = arith.constant 0.666666686 : f32
    %23 = vector.broadcast %cst_17 : f32 to vector<16x128xf32>
    %24 = arith.mulf %23, %6 : vector<16x128xf32>
    %25 = arith.addf %13, %22 : vector<16x128xf32>
    %26 = arith.addf %25, %11 : vector<16x128xf32>
    %cst_18 = arith.constant 0.333333343 : f32
    %27 = vector.broadcast %cst_18 : f32 to vector<16x128xf32>
    %28 = arith.mulf %27, %26 : vector<16x128xf32>
    %29 = arith.addf %24, %28 : vector<16x128xf32>
    %30 = math.tanh %29 : vector<16x128xf32>
    %31 = arith.index_cast %c0_i32_10 : i32 to index
    %c0_19 = arith.constant 0 : index
    %c0_20 = arith.constant 0 : index
    %32 = vector.load %arg6[%31, %c0_19, %c0_20] : memref<8x16x128xf32, #tpu.memory_space<vmem>>, vector<1x16x128xf32>
    %33 = vector.shape_cast %32 : vector<1x16x128xf32> to vector<16x128xf32>
    %34 = vector.shape_cast %29 : vector<16x128xf32> to vector<1x16x128xf32>
    tpu.vector_store %arg6[%31, %c0_19, %c0_20], %34 {strides = array<i32>} : memref<8x16x128xf32, #tpu.memory_space<vmem>>, vector<1x16x128xf32>,
    %35 = arith.index_cast %c0_i32_10 : i32 to index
    %c0_21 = arith.constant 0 : index
    %c0_22 = arith.constant 0 : index
    %36 = vector.load %arg7[%35, %c0_21, %c0_22] : memref<8x16x128xf32, #tpu.memory_space<vmem>>, vector<1x16x128xf32>
    %37 = vector.shape_cast %36 : vector<1x16x128xf32> to vector<16x128xf32>
    %38 = vector.shape_cast %30 : vector<16x128xf32> to vector<1x16x128xf32>
    tpu.vector_store %arg7[%35, %c0_21, %c0_22], %38 {strides = array<i32>} : memref<8x16x128xf32, #tpu.memory_space<vmem>>, vector<1x16x128xf32>,
    %39 = arith.truncf %30 : vector<16x128xf32> to vector<16x128xbf16>
    %c1_i32 = arith.constant 1 : i32
    %40 = arith.index_cast %c1_i32 : i32 to index
    %c0_23 = arith.constant 0 : index
    %c0_24 = arith.constant 0 : index
    %41 = vector.load %arg2[%40, %c0_23, %c0_24] : memref<8x16x24xbf16, #tpu.memory_space<vmem>>, vector<1x16x24xbf16>
    %42 = vector.shape_cast %41 : vector<1x16x24xbf16> to vector<16x24xbf16>
    %cst_25 = arith.constant dense<0.000000e+00> : vector<16x128xf32>
    %43 = tpu.matmul %42, %3, %cst_25 {dimension_numbers = #tpu.dot_dimension_numbers<[1], [0], [0], [1], [0, 0, 1, 1], [], []>} : vector<16x24xbf16>, vector<24x128xbf16>, vector<16x128xf32> -> vector<16x128xf32>
    %cst_26 = arith.constant dense<0.000000e+00> : vector<16x384xf32>
    %44 = tpu.matmul %39, %4, %cst_26 {dimension_numbers = #tpu.dot_dimension_numbers<[1], [0], [0], [1], [0, 0, 1, 1], [], []>} : vector<16x128xbf16>, vector<128x384xbf16>, vector<16x384xf32> -> vector<16x384xf32>
    %45 = vector.extract_strided_slice %44 {offsets = [0, 0], sizes = [16, 128], strides = [1, 1]} : vector<16x384xf32> to vector<16x128xf32>
    %46 = vector.extract_strided_slice %44 {offsets = [0, 128], sizes = [16, 128], strides = [1, 1]} : vector<16x384xf32> to vector<16x128xf32>
    %cst_27 = arith.constant 0.000000e+00 : f32
    %47 = vector.broadcast %cst_27 : f32 to vector<16x128xf32>
    %48 = arith.maximumf %46, %47 : vector<16x128xf32>
    %49 = vector.extract_strided_slice %44 {offsets = [0, 256], sizes = [16, 128], strides = [1, 1]} : vector<16x384xf32> to vector<16x128xf32>
    %50 = arith.subf %49, %48 : vector<16x128xf32>
    %cst_28 = arith.constant 0.000000e+00 : f32
    %51 = vector.broadcast %cst_28 : f32 to vector<16x128xf32>
    %52 = arith.maximumf %50, %51 : vector<16x128xf32>
    %53 = arith.truncf %52 : vector<16x128xf32> to vector<16x128xbf16>
    %cst_29 = arith.constant dense<0.000000e+00> : vector<16x128xf32>
    %54 = tpu.matmul %53, %5, %cst_29 {dimension_numbers = #tpu.dot_dimension_numbers<[1], [0], [0], [1], [0, 0, 1, 1], [], []>} : vector<16x128xbf16>, vector<128x128xbf16>, vector<16x128xf32> -> vector<16x128xf32>
    %cst_30 = arith.constant 0.666666686 : f32
    %55 = vector.broadcast %cst_30 : f32 to vector<16x128xf32>
    %56 = arith.mulf %55, %29 : vector<16x128xf32>
    %57 = arith.addf %45, %54 : vector<16x128xf32>
    %58 = arith.addf %57, %43 : vector<16x128xf32>
    %cst_31 = arith.constant 0.333333343 : f32
    %59 = vector.broadcast %cst_31 : f32 to vector<16x128xf32>
    %60 = arith.mulf %59, %58 : vector<16x128xf32>
    %61 = arith.addf %56, %60 : vector<16x128xf32>
    %62 = math.tanh %61 : vector<16x128xf32>
    %63 = arith.index_cast %c1_i32 : i32 to index
    %c0_32 = arith.constant 0 : index
    %c0_33 = arith.constant 0 : index
    %64 = vector.load %arg6[%63, %c0_32, %c0_33] : memref<8x16x128xf32, #tpu.memory_space<vmem>>, vector<1x16x128xf32>
    %65 = vector.shape_cast %64 : vector<1x16x128xf32> to vector<16x128xf32>
    %66 = vector.shape_cast %61 : vector<16x128xf32> to vector<1x16x128xf32>
    tpu.vector_store %arg6[%63, %c0_32, %c0_33], %66 {strides = array<i32>} : memref<8x16x128xf32, #tpu.memory_space<vmem>>, vector<1x16x128xf32>,
    %67 = arith.index_cast %c1_i32 : i32 to index
    %c0_34 = arith.constant 0 : index
    %c0_35 = arith.constant 0 : index
    %68 = vector.load %arg7[%67, %c0_34, %c0_35] : memref<8x16x128xf32, #tpu.memory_space<vmem>>, vector<1x16x128xf32>
    %69 = vector.shape_cast %68 : vector<1x16x128xf32> to vector<16x128xf32>
    %70 = vector.shape_cast %62 : vector<16x128xf32> to vector<1x16x128xf32>
    tpu.vector_store %arg7[%67, %c0_34, %c0_35], %70 {strides = array<i32>} : memref<8x16x128xf32, #tpu.memory_space<vmem>>, vector<1x16x128xf32>,
    %71 = arith.truncf %62 : vector<16x128xf32> to vector<16x128xbf16>
    %c2_i32 = arith.constant 2 : i32
    %72 = arith.index_cast %c2_i32 : i32 to index
    %c0_36 = arith.constant 0 : index
    %c0_37 = arith.constant 0 : index
    %73 = vector.load %arg2[%72, %c0_36, %c0_37] : memref<8x16x24xbf16, #tpu.memory_space<vmem>>, vector<1x16x24xbf16>
    %74 = vector.shape_cast %73 : vector<1x16x24xbf16> to vector<16x24xbf16>
    %cst_38 = arith.constant dense<0.000000e+00> : vector<16x128xf32>
    %75 = tpu.matmul %74, %3, %cst_38 {dimension_numbers = #tpu.dot_dimension_numbers<[1], [0], [0], [1], [0, 0, 1, 1], [], []>} : vector<16x24xbf16>, vector<24x128xbf16>, vector<16x128xf32> -> vector<16x128xf32>
    %cst_39 = arith.constant dense<0.000000e+00> : vector<16x384xf32>
    %76 = tpu.matmul %71, %4, %cst_39 {dimension_numbers = #tpu.dot_dimension_numbers<[1], [0], [0], [1], [0, 0, 1, 1], [], []>} : vector<16x128xbf16>, vector<128x384xbf16>, vector<16x384xf32> -> vector<16x384xf32>
    %77 = vector.extract_strided_slice %76 {offsets = [0, 0], sizes = [16, 128], strides = [1, 1]} : vector<16x384xf32> to vector<16x128xf32>
    %78 = vector.extract_strided_slice %76 {offsets = [0, 128], sizes = [16, 128], strides = [1, 1]} : vector<16x384xf32> to vector<16x128xf32>
    %cst_40 = arith.constant 0.000000e+00 : f32
    %79 = vector.broadcast %cst_40 : f32 to vector<16x128xf32>
    %80 = arith.maximumf %78, %79 : vector<16x128xf32>
    %81 = vector.extract_strided_slice %76 {offsets = [0, 256], sizes = [16, 128], strides = [1, 1]} : vector<16x384xf32> to vector<16x128xf32>
    %82 = arith.subf %81, %80 : vector<16x128xf32>
    %cst_41 = arith.constant 0.000000e+00 : f32
    %83 = vector.broadcast %cst_41 : f32 to vector<16x128xf32>
    %84 = arith.maximumf %82, %83 : vector<16x128xf32>
    %85 = arith.truncf %84 : vector<16x128xf32> to vector<16x128xbf16>
    %cst_42 = arith.constant dense<0.000000e+00> : vector<16x128xf32>
    %86 = tpu.matmul %85, %5, %cst_42 {dimension_numbers = #tpu.dot_dimension_numbers<[1], [0], [0], [1], [0, 0, 1, 1], [], []>} : vector<16x128xbf16>, vector<128x128xbf16>, vector<16x128xf32> -> vector<16x128xf32>
    %cst_43 = arith.constant 0.666666686 : f32
    %87 = vector.broadcast %cst_43 : f32 to vector<16x128xf32>
    %88 = arith.mulf %87, %61 : vector<16x128xf32>
    %89 = arith.addf %77, %86 : vector<16x128xf32>
    %90 = arith.addf %89, %75 : vector<16x128xf32>
    %cst_44 = arith.constant 0.333333343 : f32
    %91 = vector.broadcast %cst_44 : f32 to vector<16x128xf32>
    %92 = arith.mulf %91, %90 : vector<16x128xf32>
    %93 = arith.addf %88, %92 : vector<16x128xf32>
    %94 = math.tanh %93 : vector<16x128xf32>
    %95 = arith.index_cast %c2_i32 : i32 to index
    %c0_45 = arith.constant 0 : index
    %c0_46 = arith.constant 0 : index
    %96 = vector.load %arg6[%95, %c0_45, %c0_46] : memref<8x16x128xf32, #tpu.memory_space<vmem>>, vector<1x16x128xf32>
    %97 = vector.shape_cast %96 : vector<1x16x128xf32> to vector<16x128xf32>
    %98 = vector.shape_cast %93 : vector<16x128xf32> to vector<1x16x128xf32>
    tpu.vector_store %arg6[%95, %c0_45, %c0_46], %98 {strides = array<i32>} : memref<8x16x128xf32, #tpu.memory_space<vmem>>, vector<1x16x128xf32>,
    %99 = arith.index_cast %c2_i32 : i32 to index
    %c0_47 = arith.constant 0 : index
    %c0_48 = arith.constant 0 : index
    %100 = vector.load %arg7[%99, %c0_47, %c0_48] : memref<8x16x128xf32, #tpu.memory_space<vmem>>, vector<1x16x128xf32>
    %101 = vector.shape_cast %100 : vector<1x16x128xf32> to vector<16x128xf32>
    %102 = vector.shape_cast %94 : vector<16x128xf32> to vector<1x16x128xf32>
    tpu.vector_store %arg7[%99, %c0_47, %c0_48], %102 {strides = array<i32>} : memref<8x16x128xf32, #tpu.memory_space<vmem>>, vector<1x16x128xf32>,
    %103 = arith.truncf %94 : vector<16x128xf32> to vector<16x128xbf16>
    %c3_i32 = arith.constant 3 : i32
    %104 = arith.index_cast %c3_i32 : i32 to index
    %c0_49 = arith.constant 0 : index
    %c0_50 = arith.constant 0 : index
    %105 = vector.load %arg2[%104, %c0_49, %c0_50] : memref<8x16x24xbf16, #tpu.memory_space<vmem>>, vector<1x16x24xbf16>
    %106 = vector.shape_cast %105 : vector<1x16x24xbf16> to vector<16x24xbf16>
    %cst_51 = arith.constant dense<0.000000e+00> : vector<16x128xf32>
    %107 = tpu.matmul %106, %3, %cst_51 {dimension_numbers = #tpu.dot_dimension_numbers<[1], [0], [0], [1], [0, 0, 1, 1], [], []>} : vector<16x24xbf16>, vector<24x128xbf16>, vector<16x128xf32> -> vector<16x128xf32>
    %cst_52 = arith.constant dense<0.000000e+00> : vector<16x384xf32>
    %108 = tpu.matmul %103, %4, %cst_52 {dimension_numbers = #tpu.dot_dimension_numbers<[1], [0], [0], [1], [0, 0, 1, 1], [], []>} : vector<16x128xbf16>, vector<128x384xbf16>, vector<16x384xf32> -> vector<16x384xf32>
    %109 = vector.extract_strided_slice %108 {offsets = [0, 0], sizes = [16, 128], strides = [1, 1]} : vector<16x384xf32> to vector<16x128xf32>
    %110 = vector.extract_strided_slice %108 {offsets = [0, 128], sizes = [16, 128], strides = [1, 1]} : vector<16x384xf32> to vector<16x128xf32>
    %cst_53 = arith.constant 0.000000e+00 : f32
    %111 = vector.broadcast %cst_53 : f32 to vector<16x128xf32>
    %112 = arith.maximumf %110, %111 : vector<16x128xf32>
    %113 = vector.extract_strided_slice %108 {offsets = [0, 256], sizes = [16, 128], strides = [1, 1]} : vector<16x384xf32> to vector<16x128xf32>
    %114 = arith.subf %113, %112 : vector<16x128xf32>
    %cst_54 = arith.constant 0.000000e+00 : f32
    %115 = vector.broadcast %cst_54 : f32 to vector<16x128xf32>
    %116 = arith.maximumf %114, %115 : vector<16x128xf32>
    %117 = arith.truncf %116 : vector<16x128xf32> to vector<16x128xbf16>
    %cst_55 = arith.constant dense<0.000000e+00> : vector<16x128xf32>
    %118 = tpu.matmul %117, %5, %cst_55 {dimension_numbers = #tpu.dot_dimension_numbers<[1], [0], [0], [1], [0, 0, 1, 1], [], []>} : vector<16x128xbf16>, vector<128x128xbf16>, vector<16x128xf32> -> vector<16x128xf32>
    %cst_56 = arith.constant 0.666666686 : f32
    %119 = vector.broadcast %cst_56 : f32 to vector<16x128xf32>
    %120 = arith.mulf %119, %93 : vector<16x128xf32>
    %121 = arith.addf %109, %118 : vector<16x128xf32>
    %122 = arith.addf %121, %107 : vector<16x128xf32>
    %cst_57 = arith.constant 0.333333343 : f32
    %123 = vector.broadcast %cst_57 : f32 to vector<16x128xf32>
    %124 = arith.mulf %123, %122 : vector<16x128xf32>
    %125 = arith.addf %120, %124 : vector<16x128xf32>
    %126 = math.tanh %125 : vector<16x128xf32>
    %127 = arith.index_cast %c3_i32 : i32 to index
    %c0_58 = arith.constant 0 : index
    %c0_59 = arith.constant 0 : index
    %128 = vector.load %arg6[%127, %c0_58, %c0_59] : memref<8x16x128xf32, #tpu.memory_space<vmem>>, vector<1x16x128xf32>
    %129 = vector.shape_cast %128 : vector<1x16x128xf32> to vector<16x128xf32>
    %130 = vector.shape_cast %125 : vector<16x128xf32> to vector<1x16x128xf32>
    tpu.vector_store %arg6[%127, %c0_58, %c0_59], %130 {strides = array<i32>} : memref<8x16x128xf32, #tpu.memory_space<vmem>>, vector<1x16x128xf32>,
    %131 = arith.index_cast %c3_i32 : i32 to index
    %c0_60 = arith.constant 0 : index
    %c0_61 = arith.constant 0 : index
    %132 = vector.load %arg7[%131, %c0_60, %c0_61] : memref<8x16x128xf32, #tpu.memory_space<vmem>>, vector<1x16x128xf32>
    %133 = vector.shape_cast %132 : vector<1x16x128xf32> to vector<16x128xf32>
    %134 = vector.shape_cast %126 : vector<16x128xf32> to vector<1x16x128xf32>
    tpu.vector_store %arg7[%131, %c0_60, %c0_61], %134 {strides = array<i32>} : memref<8x16x128xf32, #tpu.memory_space<vmem>>, vector<1x16x128xf32>,
    %135 = arith.truncf %126 : vector<16x128xf32> to vector<16x128xbf16>
    %c4_i32 = arith.constant 4 : i32
    %136 = arith.index_cast %c4_i32 : i32 to index
    %c0_62 = arith.constant 0 : index
    %c0_63 = arith.constant 0 : index
    %137 = vector.load %arg2[%136, %c0_62, %c0_63] : memref<8x16x24xbf16, #tpu.memory_space<vmem>>, vector<1x16x24xbf16>
    %138 = vector.shape_cast %137 : vector<1x16x24xbf16> to vector<16x24xbf16>
    %cst_64 = arith.constant dense<0.000000e+00> : vector<16x128xf32>
    %139 = tpu.matmul %138, %3, %cst_64 {dimension_numbers = #tpu.dot_dimension_numbers<[1], [0], [0], [1], [0, 0, 1, 1], [], []>} : vector<16x24xbf16>, vector<24x128xbf16>, vector<16x128xf32> -> vector<16x128xf32>
    %cst_65 = arith.constant dense<0.000000e+00> : vector<16x384xf32>
    %140 = tpu.matmul %135, %4, %cst_65 {dimension_numbers = #tpu.dot_dimension_numbers<[1], [0], [0], [1], [0, 0, 1, 1], [], []>} : vector<16x128xbf16>, vector<128x384xbf16>, vector<16x384xf32> -> vector<16x384xf32>
    %141 = vector.extract_strided_slice %140 {offsets = [0, 0], sizes = [16, 128], strides = [1, 1]} : vector<16x384xf32> to vector<16x128xf32>
    %142 = vector.extract_strided_slice %140 {offsets = [0, 128], sizes = [16, 128], strides = [1, 1]} : vector<16x384xf32> to vector<16x128xf32>
    %cst_66 = arith.constant 0.000000e+00 : f32
    %143 = vector.broadcast %cst_66 : f32 to vector<16x128xf32>
    %144 = arith.maximumf %142, %143 : vector<16x128xf32>
    %145 = vector.extract_strided_slice %140 {offsets = [0, 256], sizes = [16, 128], strides = [1, 1]} : vector<16x384xf32> to vector<16x128xf32>
    %146 = arith.subf %145, %144 : vector<16x128xf32>
    %cst_67 = arith.constant 0.000000e+00 : f32
    %147 = vector.broadcast %cst_67 : f32 to vector<16x128xf32>
    %148 = arith.maximumf %146, %147 : vector<16x128xf32>
    %149 = arith.truncf %148 : vector<16x128xf32> to vector<16x128xbf16>
    %cst_68 = arith.constant dense<0.000000e+00> : vector<16x128xf32>
    %150 = tpu.matmul %149, %5, %cst_68 {dimension_numbers = #tpu.dot_dimension_numbers<[1], [0], [0], [1], [0, 0, 1, 1], [], []>} : vector<16x128xbf16>, vector<128x128xbf16>, vector<16x128xf32> -> vector<16x128xf32>
    %cst_69 = arith.constant 0.666666686 : f32
    %151 = vector.broadcast %cst_69 : f32 to vector<16x128xf32>
    %152 = arith.mulf %151, %125 : vector<16x128xf32>
    %153 = arith.addf %141, %150 : vector<16x128xf32>
    %154 = arith.addf %153, %139 : vector<16x128xf32>
    %cst_70 = arith.constant 0.333333343 : f32
    %155 = vector.broadcast %cst_70 : f32 to vector<16x128xf32>
    %156 = arith.mulf %155, %154 : vector<16x128xf32>
    %157 = arith.addf %152, %156 : vector<16x128xf32>
    %158 = math.tanh %157 : vector<16x128xf32>
    %159 = arith.index_cast %c4_i32 : i32 to index
    %c0_71 = arith.constant 0 : index
    %c0_72 = arith.constant 0 : index
    %160 = vector.load %arg6[%159, %c0_71, %c0_72] : memref<8x16x128xf32, #tpu.memory_space<vmem>>, vector<1x16x128xf32>
    %161 = vector.shape_cast %160 : vector<1x16x128xf32> to vector<16x128xf32>
    %162 = vector.shape_cast %157 : vector<16x128xf32> to vector<1x16x128xf32>
    tpu.vector_store %arg6[%159, %c0_71, %c0_72], %162 {strides = array<i32>} : memref<8x16x128xf32, #tpu.memory_space<vmem>>, vector<1x16x128xf32>,
    %163 = arith.index_cast %c4_i32 : i32 to index
    %c0_73 = arith.constant 0 : index
    %c0_74 = arith.constant 0 : index
    %164 = vector.load %arg7[%163, %c0_73, %c0_74] : memref<8x16x128xf32, #tpu.memory_space<vmem>>, vector<1x16x128xf32>
    %165 = vector.shape_cast %164 : vector<1x16x128xf32> to vector<16x128xf32>
    %166 = vector.shape_cast %158 : vector<16x128xf32> to vector<1x16x128xf32>
    tpu.vector_store %arg7[%163, %c0_73, %c0_74], %166 {strides = array<i32>} : memref<8x16x128xf32, #tpu.memory_space<vmem>>, vector<1x16x128xf32>,
    %167 = arith.truncf %158 : vector<16x128xf32> to vector<16x128xbf16>
    %c5_i32 = arith.constant 5 : i32
    %168 = arith.index_cast %c5_i32 : i32 to index
    %c0_75 = arith.constant 0 : index
    %c0_76 = arith.constant 0 : index
    %169 = vector.load %arg2[%168, %c0_75, %c0_76] : memref<8x16x24xbf16, #tpu.memory_space<vmem>>, vector<1x16x24xbf16>
    %170 = vector.shape_cast %169 : vector<1x16x24xbf16> to vector<16x24xbf16>
    %cst_77 = arith.constant dense<0.000000e+00> : vector<16x128xf32>
    %171 = tpu.matmul %170, %3, %cst_77 {dimension_numbers = #tpu.dot_dimension_numbers<[1], [0], [0], [1], [0, 0, 1, 1], [], []>} : vector<16x24xbf16>, vector<24x128xbf16>, vector<16x128xf32> -> vector<16x128xf32>
    %cst_78 = arith.constant dense<0.000000e+00> : vector<16x384xf32>
    %172 = tpu.matmul %167, %4, %cst_78 {dimension_numbers = #tpu.dot_dimension_numbers<[1], [0], [0], [1], [0, 0, 1, 1], [], []>} : vector<16x128xbf16>, vector<128x384xbf16>, vector<16x384xf32> -> vector<16x384xf32>
    %173 = vector.extract_strided_slice %172 {offsets = [0, 0], sizes = [16, 128], strides = [1, 1]} : vector<16x384xf32> to vector<16x128xf32>
    %174 = vector.extract_strided_slice %172 {offsets = [0, 128], sizes = [16, 128], strides = [1, 1]} : vector<16x384xf32> to vector<16x128xf32>
    %cst_79 = arith.constant 0.000000e+00 : f32
    %175 = vector.broadcast %cst_79 : f32 to vector<16x128xf32>
    %176 = arith.maximumf %174, %175 : vector<16x128xf32>
    %177 = vector.extract_strided_slice %172 {offsets = [0, 256], sizes = [16, 128], strides = [1, 1]} : vector<16x384xf32> to vector<16x128xf32>
    %178 = arith.subf %177, %176 : vector<16x128xf32>
    %cst_80 = arith.constant 0.000000e+00 : f32
    %179 = vector.broadcast %cst_80 : f32 to vector<16x128xf32>
    %180 = arith.maximumf %178, %179 : vector<16x128xf32>
    %181 = arith.truncf %180 : vector<16x128xf32> to vector<16x128xbf16>
    %cst_81 = arith.constant dense<0.000000e+00> : vector<16x128xf32>
    %182 = tpu.matmul %181, %5, %cst_81 {dimension_numbers = #tpu.dot_dimension_numbers<[1], [0], [0], [1], [0, 0, 1, 1], [], []>} : vector<16x128xbf16>, vector<128x128xbf16>, vector<16x128xf32> -> vector<16x128xf32>
    %cst_82 = arith.constant 0.666666686 : f32
    %183 = vector.broadcast %cst_82 : f32 to vector<16x128xf32>
    %184 = arith.mulf %183, %157 : vector<16x128xf32>
    %185 = arith.addf %173, %182 : vector<16x128xf32>
    %186 = arith.addf %185, %171 : vector<16x128xf32>
    %cst_83 = arith.constant 0.333333343 : f32
    %187 = vector.broadcast %cst_83 : f32 to vector<16x128xf32>
    %188 = arith.mulf %187, %186 : vector<16x128xf32>
    %189 = arith.addf %184, %188 : vector<16x128xf32>
    %190 = math.tanh %189 : vector<16x128xf32>
    %191 = arith.index_cast %c5_i32 : i32 to index
    %c0_84 = arith.constant 0 : index
    %c0_85 = arith.constant 0 : index
    %192 = vector.load %arg6[%191, %c0_84, %c0_85] : memref<8x16x128xf32, #tpu.memory_space<vmem>>, vector<1x16x128xf32>
    %193 = vector.shape_cast %192 : vector<1x16x128xf32> to vector<16x128xf32>
    %194 = vector.shape_cast %189 : vector<16x128xf32> to vector<1x16x128xf32>
    tpu.vector_store %arg6[%191, %c0_84, %c0_85], %194 {strides = array<i32>} : memref<8x16x128xf32, #tpu.memory_space<vmem>>, vector<1x16x128xf32>,
    %195 = arith.index_cast %c5_i32 : i32 to index
    %c0_86 = arith.constant 0 : index
    %c0_87 = arith.constant 0 : index
    %196 = vector.load %arg7[%195, %c0_86, %c0_87] : memref<8x16x128xf32, #tpu.memory_space<vmem>>, vector<1x16x128xf32>
    %197 = vector.shape_cast %196 : vector<1x16x128xf32> to vector<16x128xf32>
    %198 = vector.shape_cast %190 : vector<16x128xf32> to vector<1x16x128xf32>
    tpu.vector_store %arg7[%195, %c0_86, %c0_87], %198 {strides = array<i32>} : memref<8x16x128xf32, #tpu.memory_space<vmem>>, vector<1x16x128xf32>,
    %199 = arith.truncf %190 : vector<16x128xf32> to vector<16x128xbf16>
    %c6_i32 = arith.constant 6 : i32
    %200 = arith.index_cast %c6_i32 : i32 to index
    %c0_88 = arith.constant 0 : index
    %c0_89 = arith.constant 0 : index
    %201 = vector.load %arg2[%200, %c0_88, %c0_89] : memref<8x16x24xbf16, #tpu.memory_space<vmem>>, vector<1x16x24xbf16>
    %202 = vector.shape_cast %201 : vector<1x16x24xbf16> to vector<16x24xbf16>
    %cst_90 = arith.constant dense<0.000000e+00> : vector<16x128xf32>
    %203 = tpu.matmul %202, %3, %cst_90 {dimension_numbers = #tpu.dot_dimension_numbers<[1], [0], [0], [1], [0, 0, 1, 1], [], []>} : vector<16x24xbf16>, vector<24x128xbf16>, vector<16x128xf32> -> vector<16x128xf32>
    %cst_91 = arith.constant dense<0.000000e+00> : vector<16x384xf32>
    %204 = tpu.matmul %199, %4, %cst_91 {dimension_numbers = #tpu.dot_dimension_numbers<[1], [0], [0], [1], [0, 0, 1, 1], [], []>} : vector<16x128xbf16>, vector<128x384xbf16>, vector<16x384xf32> -> vector<16x384xf32>
    %205 = vector.extract_strided_slice %204 {offsets = [0, 0], sizes = [16, 128], strides = [1, 1]} : vector<16x384xf32> to vector<16x128xf32>
    %206 = vector.extract_strided_slice %204 {offsets = [0, 128], sizes = [16, 128], strides = [1, 1]} : vector<16x384xf32> to vector<16x128xf32>
    %cst_92 = arith.constant 0.000000e+00 : f32
    %207 = vector.broadcast %cst_92 : f32 to vector<16x128xf32>
    %208 = arith.maximumf %206, %207 : vector<16x128xf32>
    %209 = vector.extract_strided_slice %204 {offsets = [0, 256], sizes = [16, 128], strides = [1, 1]} : vector<16x384xf32> to vector<16x128xf32>
    %210 = arith.subf %209, %208 : vector<16x128xf32>
    %cst_93 = arith.constant 0.000000e+00 : f32
    %211 = vector.broadcast %cst_93 : f32 to vector<16x128xf32>
    %212 = arith.maximumf %210, %211 : vector<16x128xf32>
    %213 = arith.truncf %212 : vector<16x128xf32> to vector<16x128xbf16>
    %cst_94 = arith.constant dense<0.000000e+00> : vector<16x128xf32>
    %214 = tpu.matmul %213, %5, %cst_94 {dimension_numbers = #tpu.dot_dimension_numbers<[1], [0], [0], [1], [0, 0, 1, 1], [], []>} : vector<16x128xbf16>, vector<128x128xbf16>, vector<16x128xf32> -> vector<16x128xf32>
    %cst_95 = arith.constant 0.666666686 : f32
    %215 = vector.broadcast %cst_95 : f32 to vector<16x128xf32>
    %216 = arith.mulf %215, %189 : vector<16x128xf32>
    %217 = arith.addf %205, %214 : vector<16x128xf32>
    %218 = arith.addf %217, %203 : vector<16x128xf32>
    %cst_96 = arith.constant 0.333333343 : f32
    %219 = vector.broadcast %cst_96 : f32 to vector<16x128xf32>
    %220 = arith.mulf %219, %218 : vector<16x128xf32>
    %221 = arith.addf %216, %220 : vector<16x128xf32>
    %222 = math.tanh %221 : vector<16x128xf32>
    %223 = arith.index_cast %c6_i32 : i32 to index
    %c0_97 = arith.constant 0 : index
    %c0_98 = arith.constant 0 : index
    %224 = vector.load %arg6[%223, %c0_97, %c0_98] : memref<8x16x128xf32, #tpu.memory_space<vmem>>, vector<1x16x128xf32>
    %225 = vector.shape_cast %224 : vector<1x16x128xf32> to vector<16x128xf32>
    %226 = vector.shape_cast %221 : vector<16x128xf32> to vector<1x16x128xf32>
    tpu.vector_store %arg6[%223, %c0_97, %c0_98], %226 {strides = array<i32>} : memref<8x16x128xf32, #tpu.memory_space<vmem>>, vector<1x16x128xf32>,
    %227 = arith.index_cast %c6_i32 : i32 to index
    %c0_99 = arith.constant 0 : index
    %c0_100 = arith.constant 0 : index
    %228 = vector.load %arg7[%227, %c0_99, %c0_100] : memref<8x16x128xf32, #tpu.memory_space<vmem>>, vector<1x16x128xf32>
    %229 = vector.shape_cast %228 : vector<1x16x128xf32> to vector<16x128xf32>
    %230 = vector.shape_cast %222 : vector<16x128xf32> to vector<1x16x128xf32>
    tpu.vector_store %arg7[%227, %c0_99, %c0_100], %230 {strides = array<i32>} : memref<8x16x128xf32, #tpu.memory_space<vmem>>, vector<1x16x128xf32>,
    %231 = arith.truncf %222 : vector<16x128xf32> to vector<16x128xbf16>
    %c7_i32 = arith.constant 7 : i32
    %232 = arith.index_cast %c7_i32 : i32 to index
    %c0_101 = arith.constant 0 : index
    %c0_102 = arith.constant 0 : index
    %233 = vector.load %arg2[%232, %c0_101, %c0_102] : memref<8x16x24xbf16, #tpu.memory_space<vmem>>, vector<1x16x24xbf16>
    %234 = vector.shape_cast %233 : vector<1x16x24xbf16> to vector<16x24xbf16>
    %cst_103 = arith.constant dense<0.000000e+00> : vector<16x128xf32>
    %235 = tpu.matmul %234, %3, %cst_103 {dimension_numbers = #tpu.dot_dimension_numbers<[1], [0], [0], [1], [0, 0, 1, 1], [], []>} : vector<16x24xbf16>, vector<24x128xbf16>, vector<16x128xf32> -> vector<16x128xf32>
    %cst_104 = arith.constant dense<0.000000e+00> : vector<16x384xf32>
    %236 = tpu.matmul %231, %4, %cst_104 {dimension_numbers = #tpu.dot_dimension_numbers<[1], [0], [0], [1], [0, 0, 1, 1], [], []>} : vector<16x128xbf16>, vector<128x384xbf16>, vector<16x384xf32> -> vector<16x384xf32>
    %237 = vector.extract_strided_slice %236 {offsets = [0, 0], sizes = [16, 128], strides = [1, 1]} : vector<16x384xf32> to vector<16x128xf32>
    %238 = vector.extract_strided_slice %236 {offsets = [0, 128], sizes = [16, 128], strides = [1, 1]} : vector<16x384xf32> to vector<16x128xf32>
    %cst_105 = arith.constant 0.000000e+00 : f32
    %239 = vector.broadcast %cst_105 : f32 to vector<16x128xf32>
    %240 = arith.maximumf %238, %239 : vector<16x128xf32>
    %241 = vector.extract_strided_slice %236 {offsets = [0, 256], sizes = [16, 128], strides = [1, 1]} : vector<16x384xf32> to vector<16x128xf32>
    %242 = arith.subf %241, %240 : vector<16x128xf32>
    %cst_106 = arith.constant 0.000000e+00 : f32
    %243 = vector.broadcast %cst_106 : f32 to vector<16x128xf32>
    %244 = arith.maximumf %242, %243 : vector<16x128xf32>
    %245 = arith.truncf %244 : vector<16x128xf32> to vector<16x128xbf16>
    %cst_107 = arith.constant dense<0.000000e+00> : vector<16x128xf32>
    %246 = tpu.matmul %245, %5, %cst_107 {dimension_numbers = #tpu.dot_dimension_numbers<[1], [0], [0], [1], [0, 0, 1, 1], [], []>} : vector<16x128xbf16>, vector<128x128xbf16>, vector<16x128xf32> -> vector<16x128xf32>
    %cst_108 = arith.constant 0.666666686 : f32
    %247 = vector.broadcast %cst_108 : f32 to vector<16x128xf32>
    %248 = arith.mulf %247, %221 : vector<16x128xf32>
    %249 = arith.addf %237, %246 : vector<16x128xf32>
    %250 = arith.addf %249, %235 : vector<16x128xf32>
    %cst_109 = arith.constant 0.333333343 : f32
    %251 = vector.broadcast %cst_109 : f32 to vector<16x128xf32>
    %252 = arith.mulf %251, %250 : vector<16x128xf32>
    %253 = arith.addf %248, %252 : vector<16x128xf32>
    %254 = math.tanh %253 : vector<16x128xf32>
    %255 = arith.index_cast %c7_i32 : i32 to index
    %c0_110 = arith.constant 0 : index
    %c0_111 = arith.constant 0 : index
    %256 = vector.load %arg6[%255, %c0_110, %c0_111] : memref<8x16x128xf32, #tpu.memory_space<vmem>>, vector<1x16x128xf32>
    %257 = vector.shape_cast %256 : vector<1x16x128xf32> to vector<16x128xf32>
    %258 = vector.shape_cast %253 : vector<16x128xf32> to vector<1x16x128xf32>
    tpu.vector_store %arg6[%255, %c0_110, %c0_111], %258 {strides = array<i32>} : memref<8x16x128xf32, #tpu.memory_space<vmem>>, vector<1x16x128xf32>,
    %259 = arith.index_cast %c7_i32 : i32 to index
    %c0_112 = arith.constant 0 : index
    %c0_113 = arith.constant 0 : index
    %260 = vector.load %arg7[%259, %c0_112, %c0_113] : memref<8x16x128xf32, #tpu.memory_space<vmem>>, vector<1x16x128xf32>
    %261 = vector.shape_cast %260 : vector<1x16x128xf32> to vector<16x128xf32>
    %262 = vector.shape_cast %254 : vector<16x128xf32> to vector<1x16x128xf32>
    tpu.vector_store %arg7[%259, %c0_112, %c0_113], %262 {strides = array<i32>} : memref<8x16x128xf32, #tpu.memory_space<vmem>>, vector<1x16x128xf32>,
    %263 = arith.truncf %254 : vector<16x128xf32> to vector<16x128xbf16>
    %c8_i32 = arith.constant 8 : i32
    %c0_114 = arith.constant 0 : index
    %c0_115 = arith.constant 0 : index
    %264 = vector.load %arg8[%c0_114, %c0_115] : memref<16x128xf32, #tpu.memory_space<vmem>>, vector<16x128xf32>
    tpu.vector_store %arg8[%c0_114, %c0_115], %253 {strides = array<i32>} : memref<16x128xf32, #tpu.memory_space<vmem>>, vector<16x128xf32>,
    %c0_116 = arith.constant 0 : index
    %c0_117 = arith.constant 0 : index
    %265 = vector.load %arg9[%c0_116, %c0_117] : memref<16x128xbf16, #tpu.memory_space<vmem>>, vector<16x128xbf16>
    tpu.vector_store %arg9[%c0_116, %c0_117], %263 {strides = array<i32>} : memref<16x128xbf16, #tpu.memory_space<vmem>>, vector<16x128xbf16>,
    return
  }
  func.func @transform_0(%arg0: i32) -> (i32, i32) {
    %c0_i32 = arith.constant 0 : i32
    %c0_i32_0 = arith.constant 0 : i32
    %c0_i32_1 = arith.constant 0 : i32
    return %c0_i32, %c0_i32_0 : i32, i32
  }
  func.func @transform_1(%arg0: i32) -> (i32, i32, i32) {
    %c0_i32 = arith.constant 0 : i32
    %c0_i32_0 = arith.constant 0 : i32
    %c0_i32_1 = arith.constant 0 : i32
    return %arg0, %c0_i32, %c0_i32_0 : i32, i32, i32
  }
  func.func @transform_2(%arg0: i32) -> (i32, i32) {
    %c0_i32 = arith.constant 0 : i32
    %c0_i32_0 = arith.constant 0 : i32
    %c0_i32_1 = arith.constant 0 : i32
    return %c0_i32, %c0_i32_0 : i32, i32
  }
  func.func @transform_3(%arg0: i32) -> (i32, i32) {
    %c0_i32 = arith.constant 0 : i32
    %c0_i32_0 = arith.constant 0 : i32
    %c0_i32_1 = arith.constant 0 : i32
    return %c0_i32, %c0_i32_0 : i32, i32
  }
  func.func @transform_4(%arg0: i32) -> (i32, i32) {
    %c0_i32 = arith.constant 0 : i32
    %c0_i32_0 = arith.constant 0 : i32
    %c0_i32_1 = arith.constant 0 : i32
    return %c0_i32, %c0_i32_0 : i32, i32
  }
  func.func @transform_5(%arg0: i32) -> (i32, i32, i32) {
    %c0_i32 = arith.constant 0 : i32
    %c0_i32_0 = arith.constant 0 : i32
    %c0_i32_1 = arith.constant 0 : i32
    return %arg0, %c0_i32, %c0_i32_0 : i32, i32, i32
  }
  func.func @transform_6(%arg0: i32) -> (i32, i32, i32) {
    %c0_i32 = arith.constant 0 : i32
    %c0_i32_0 = arith.constant 0 : i32
    %c0_i32_1 = arith.constant 0 : i32
    return %arg0, %c0_i32, %c0_i32_0 : i32, i32, i32
  }
}

</mosaic_0001>

<llo_original>
// kernel: tpu_custom_call.1
$region0: #{tpu_custom_call.1}
  #allocation0 [shape = 'u32[]', space=smem, size = 0x4, offset = 0x4, fixed_abs, tag = 'smem constant byte address 0x4 - core index']
  #allocation1 [shape = 'u32[72,128]{1,0:T(1,128)}', space=vmem, size = 0x9000, scoped, tag = 'internal scratch']
  #allocation2 [shape = 'f32[16,128]{1,0:T(8,128)}', space=vmem, size = 0x2000, scoped, tag = 'scratch operand']
  #allocation3 [shape = 'bf16[16,128]{1,0:T(8,128)(2,1)}', space=vmem, size = 0x1000, scoped, tag = 'scratch operand']
  %s0 = inlined_call_operand.hbm [shape: f32[16,128], index: 0, kind: input, shape index: {}]
  %s1 = inlined_call_operand.hbm [shape: bf16[16,16,24], index: 1, kind: input, shape index: {}]
  %s2 = inlined_call_operand.hbm [shape: bf16[24,128], index: 2, kind: input, shape index: {}]
  %s3 = inlined_call_operand.hbm [shape: bf16[128,384], index: 3, kind: input, shape index: {}]
  %s4 = inlined_call_operand.hbm [shape: bf16[128,128], index: 4, kind: input, shape index: {}]
  %s5 = inlined_call_operand.hbm [shape: f32[16,16,128], index: 5, kind: output, shape index: {0}]
  %s6 = inlined_call_operand.hbm [shape: f32[16,16,128], index: 6, kind: output, shape index: {1}]
  %7 = xla_tuple %s5, %s6
  %s8 = sld [smem:[#allocation0]]
  $region85: #{tpu_custom_call.1} parent=0
    _
  %s10 = ssub.s32 1, %s8
  %s11 = scalar_select 0, %s10, %s8
  $region1: #{tpu_custom_call.1} parent=0
    #allocation4 [shape = 'u8[8192]{0}', space=vmem, size = 0x2000, scoped, tag = 'input window, operand 0, single buffered']
    #allocation5 [shape = 's32[2]{0}', space=sflag, size = 0x8, scoped, tag = 'scoped memory for tpu_custom_call.1']
    #allocation6 [shape = 's32[2]{0}', space=sflag, size = 0x8, scoped, tag = 'scoped memory for tpu_custom_call.1']
    #allocation7 [shape = 'u8[65536]{0}', space=vmem, size = 0x10000, scoped, tag = 'input window, operand 1']
    #allocation8 [shape = 's32[2]{0}', space=sflag, size = 0x8, scoped, tag = 'scoped memory for tpu_custom_call.1']
    #allocation9 [shape = 'u8[6144]{0}', space=vmem, size = 0x1800, scoped, tag = 'input window, operand 2, single buffered']
    #allocation10 [shape = 'u8[98304]{0}', space=vmem, size = 0x18000, scoped, tag = 'input window, operand 3, single buffered']
    #allocation11 [shape = 's32[1]{0}', space=sflag, size = 0x4, scoped, tag = 'scoped memory for tpu_custom_call.1']
    #allocation12 [shape = 'u8[32768]{0}', space=vmem, size = 0x8000, scoped, tag = 'input window, operand 4, single buffered']
    #allocation13 [shape = 'u8[131072]{0}', space=vmem, size = 0x20000, scoped, tag = 'output window, operand 0']
    #allocation14 [shape = 'u8[131072]{0}', space=vmem, size = 0x20000, scoped, tag = 'output window, operand 1']
    #allocation15 [shape = 's32[2]{0}', space=sflag, size = 0x8, scoped, tag = 'scoped memory for tpu_custom_call.1']
    %12 = vsyncpa [#allocation5], 0
    %13 = vsyncpa [#allocation8], 0
    %s14 = scalar_lea.sflag [#allocation8], 1
    %15 = vsyncpa %s14, 0
    %16 = vsyncpa [#allocation11], 0
    %17 = vsyncpa [#allocation6], 0
    %s18 = scalar_lea.sflag [#allocation6], 1
    %19 = vsyncpa %s18, 0
    %20 = vsyncpa [#allocation15], 0
    %s21 = scalar_lea.sflag [#allocation15], 1
    %22 = vsyncpa %s21, 0
    loop: start=0, step=1, limit=4
    $region2: #{tpu_custom_call.1} parent=1 // loop_pre_header
      _
    $region3: #{tpu_custom_call.1} parent=1 // loop_header
      %s24 = sphi 0, %s28
      %p25 = scmp.ge.s32.totalorder %s24, 4
      %s32 = sphi 0, %s32
      %s34 = sphi 0, %s32
      %s35 = sphi 0, %s34
      %s49 = sphi 0, %s35
      %s55 = sphi 0, %s57
      %s58 = sphi 0, %s55
      %s59 = sphi 0, %s58
      %s75 = sphi 0, %s59
      %s79 = sphi 0, %s79
      %s81 = sphi 0, %s79
      %s82 = sphi 0, %s81
      %s96 = sphi 0, %s82
      %s100 = sphi 0, %s100
      %s102 = sphi 0, %s100
      %s103 = sphi 0, %s102
      %s117 = sphi 0, %s103
      %s121 = sphi 0, %s121
      %s123 = sphi 0, %s121
      %s124 = sphi 0, %s123
      %s138 = sphi 0, %s124
      %s144 = sphi 0, %s146
      %s147 = sphi 0, %s144
      %s148 = sphi 0, %s147
      %s164 = sphi 0, %s148
      %s170 = sphi 0, %s172
      %s173 = sphi 0, %s170
      %s174 = sphi 0, %s173
      %s190 = sphi 0, %s174
    $region4: #{tpu_custom_call.1} parent=1 // loop_header_branch
      %27 = sbr.rel (%p25) target = $region8
    $region5: #{tpu_custom_call.1} parent=1 // loop_body
      %s29 = ssub.s32 %s24, 1
      %s30 = ssub.s32 %s24, 2
      %s31 = sadd.s32 %s24, 1
      %s33 = sadd.s32 %s32, 1
      %p36 = scmp.eq.s32.totalorder %s24, 1
      %p37 = scmp.ne.s32.totalorder %s32, %s34
      %p38 = scmp.eq.s32.totalorder %s24, 0
      %p39 = por %p37, %p38
      %p40 = scmp.ne.s32.totalorder %s32, %s34
      %p41 = scmp.eq.s32.totalorder %s29, 1
      %p42 = por %p40, %p41
      %p43 = scmp.ne.s32.totalorder %s34, %s35
      %p44 = scmp.eq.s32.totalorder %s29, 0
      %p45 = por %p43, %p44
      %p46 = scmp.ne.s32.totalorder %s34, %s35
      %p47 = scmp.eq.s32.totalorder %s30, 1
      %p48 = por %p46, %p47
      %p50 = scmp.ne.s32.totalorder %s35, %s49
      %p51 = scmp.eq.s32.totalorder %s30, 0
      %p52 = por %p50, %p51
      %s53 = ssub.s32 %s24, %s31
      %p54 = scmp.eq.s32.totalorder %s53, 0
      %s56 = sadd.s32 %s55, 1
      %s57 = scalar_select %p54, %s55, %s56
      %p60 = pneg %p54
      %p61 = scmp.eq.s32.totalorder %s24, 1
      %p62 = por %p60, %p61
      %p63 = scmp.ne.s32.totalorder %s55, %s58
      %p64 = scmp.eq.s32.totalorder %s24, 0
      %p65 = por %p63, %p64
      %p66 = scmp.ne.s32.totalorder %s55, %s58
      %p67 = scmp.eq.s32.totalorder %s29, 1
      %p68 = por %p66, %p67
      %p69 = scmp.ne.s32.totalorder %s58, %s59
      %p70 = scmp.eq.s32.totalorder %s29, 0
      %p71 = por %p69, %p70
      %p72 = scmp.ne.s32.totalorder %s58, %s59
      %p73 = scmp.eq.s32.totalorder %s30, 1
      %p74 = por %p72, %p73
      %p76 = scmp.ne.s32.totalorder %s59, %s75
      %p77 = scmp.eq.s32.totalorder %s30, 0
      %p78 = por %p76, %p77
      %s80 = sadd.s32 %s79, 1
      %p83 = scmp.eq.s32.totalorder %s24, 1
      %p84 = scmp.ne.s32.totalorder %s79, %s81
      %p85 = scmp.eq.s32.totalorder %s24, 0
      %p86 = por %p84, %p85
      %p87 = scmp.ne.s32.totalorder %s79, %s81
      %p88 = scmp.eq.s32.totalorder %s29, 1
      %p89 = por %p87, %p88
      %p90 = scmp.ne.s32.totalorder %s81, %s82
      %p91 = scmp.eq.s32.totalorder %s29, 0
      %p92 = por %p90, %p91
      %p93 = scmp.ne.s32.totalorder %s81, %s82
      %p94 = scmp.eq.s32.totalorder %s30, 1
      %p95 = por %p93, %p94
      %p97 = scmp.ne.s32.totalorder %s82, %s96
      %p98 = scmp.eq.s32.totalorder %s30, 0
      %p99 = por %p97, %p98
      %s101 = sadd.s32 %s100, 1
      %p104 = scmp.eq.s32.totalorder %s24, 1
      %p105 = scmp.ne.s32.totalorder %s100, %s102
      %p106 = scmp.eq.s32.totalorder %s24, 0
      %p107 = por %p105, %p106
      %p108 = scmp.ne.s32.totalorder %s100, %s102
      %p109 = scmp.eq.s32.totalorder %s29, 1
      %p110 = por %p108, %p109
      %p111 = scmp.ne.s32.totalorder %s102, %s103
      %p112 = scmp.eq.s32.totalorder %s29, 0
      %p113 = por %p111, %p112
      %p114 = scmp.ne.s32.totalorder %s102, %s103
      %p115 = scmp.eq.s32.totalorder %s30, 1
      %p116 = por %p114, %p115
      %p118 = scmp.ne.s32.totalorder %s103, %s117
      %p119 = scmp.eq.s32.totalorder %s30, 0
      %p120 = por %p118, %p119
      %s122 = sadd.s32 %s121, 1
      %p125 = scmp.eq.s32.totalorder %s24, 1
      %p126 = scmp.ne.s32.totalorder %s121, %s123
      %p127 = scmp.eq.s32.totalorder %s24, 0
      %p128 = por %p126, %p127
      %p129 = scmp.ne.s32.totalorder %s121, %s123
      %p130 = scmp.eq.s32.totalorder %s29, 1
      %p131 = por %p129, %p130
      %p132 = scmp.ne.s32.totalorder %s123, %s124
      %p133 = scmp.eq.s32.totalorder %s29, 0
      %p134 = por %p132, %p133
      %p135 = scmp.ne.s32.totalorder %s123, %s124
      %p136 = scmp.eq.s32.totalorder %s30, 1
      %p137 = por %p135, %p136
      %p139 = scmp.ne.s32.totalorder %s124, %s138
      %p140 = scmp.eq.s32.totalorder %s30, 0
      %p141 = por %p139, %p140
      %s142 = ssub.s32 %s24, %s31
      %p143 = scmp.eq.s32.totalorder %s142, 0
      %s145 = sadd.s32 %s144, 1
      %s146 = scalar_select %p143, %s144, %s145
      %p149 = pneg %p143
      %p150 = scmp.eq.s32.totalorder %s24, 1
      %p151 = por %p149, %p150
      %p152 = scmp.ne.s32.totalorder %s144, %s147
      %p153 = scmp.eq.s32.totalorder %s24, 0
      %p154 = por %p152, %p153
      %p155 = scmp.ne.s32.totalorder %s144, %s147
      %p156 = scmp.eq.s32.totalorder %s29, 1
      %p157 = por %p155, %p156
      %p158 = scmp.ne.s32.totalorder %s147, %s148
      %p159 = scmp.eq.s32.totalorder %s29, 0
      %p160 = por %p158, %p159
      %p161 = scmp.ne.s32.totalorder %s147, %s148
      %p162 = scmp.eq.s32.totalorder %s30, 1
      %p163 = por %p161, %p162
      %p165 = scmp.ne.s32.totalorder %s148, %s164
      %p166 = scmp.eq.s32.totalorder %s30, 0
      %p167 = por %p165, %p166
      %s168 = ssub.s32 %s24, %s31
      %p169 = scmp.eq.s32.totalorder %s168, 0
      %s171 = sadd.s32 %s170, 1
      %s172 = scalar_select %p169, %s170, %s171
      %p175 = pneg %p169
      %p176 = scmp.eq.s32.totalorder %s24, 1
      %p177 = por %p175, %p176
      %p178 = scmp.ne.s32.totalorder %s170, %s173
      %p179 = scmp.eq.s32.totalorder %s24, 0
      %p180 = por %p178, %p179
      %p181 = scmp.ne.s32.totalorder %s170, %s173
      %p182 = scmp.eq.s32.totalorder %s29, 1
      %p183 = por %p181, %p182
      %p184 = scmp.ne.s32.totalorder %s173, %s174
      %p185 = scmp.eq.s32.totalorder %s29, 0
      %p186 = por %p184, %p185
      %p187 = scmp.ne.s32.totalorder %s173, %s174
      %p188 = scmp.eq.s32.totalorder %s30, 1
      %p189 = por %p187, %p188
      %p191 = scmp.ne.s32.totalorder %s174, %s190
      %p192 = scmp.eq.s32.totalorder %s30, 0
      %p193 = por %p191, %p192
      %p194 = scmp.le.s32.totalorder 1, %s24
      %p195 = scmp.lt.s32.totalorder %s24, 3
      %p196 = pnand %p194, %p195
      %p197 = pneg %p196
      // Predicated region
      $region9: #{tpu_custom_call.1} parent=5 // pred_check
        _
      $region10: #{tpu_custom_call.1} parent=5 // pred_check_branch
        %199 = sbr.rel (%p196) target = $region12
      $region11: #{tpu_custom_call.1} parent=5 // pred_region
        %s200 = ssub.s32 %s24, 1
        // Predicated region
        $region13: #{tpu_custom_call.1} parent=11 // pred_check
          %p201 = pneg %p45
        $region14: #{tpu_custom_call.1} parent=11 // pred_check_branch
          %203 = sbr.rel (%p201) target = $region16
        $region15: #{tpu_custom_call.1} parent=11 // pred_region
          %205 = vsyncadd [#allocation5], 0
          %s206 = sshll.u32 %s0, 4
          %s207 = int_to_ptr.hbm [resolvable:$true] %s206
          %s208 = sshll.u32 [#allocation4], 4
          %s209 = int_to_ptr.vmem [resolvable:$true] %s208
          %214 = dma.hbm_to_vmem [thread:$0]  %s207, 256, %s209, [#allocation5], 128, 128, 8
        $region16: #{tpu_custom_call.1} parent=11 // pred_fallthru
          _
        // Predicated region
        $region17: #{tpu_custom_call.1} parent=11 // pred_check
          %p215 = pneg %p92
        $region18: #{tpu_custom_call.1} parent=11 // pred_check_branch
          %217 = sbr.rel (%p215) target = $region20
        $region19: #{tpu_custom_call.1} parent=11 // pred_region
          %219 = vsyncadd [#allocation8], 0
          %s220 = sshll.u32 %s2, 4
          %s221 = int_to_ptr.hbm [resolvable:$true] %s220
          %s222 = sshll.u32 [#allocation9], 4
          %s223 = int_to_ptr.vmem [resolvable:$true] %s222
          %228 = dma.hbm_to_vmem [thread:$0]  %s221, 192, %s223, [#allocation8], 64, 64, 4
        $region20: #{tpu_custom_call.1} parent=11 // pred_fallthru
          _
        // Predicated region
        $region21: #{tpu_custom_call.1} parent=11 // pred_check
          %p229 = pneg %p113
        $region22: #{tpu_custom_call.1} parent=11 // pred_check_branch
          %231 = sbr.rel (%p229) target = $region24
        $region23: #{tpu_custom_call.1} parent=11 // pred_region
          %233 = vsyncadd [#allocation11], 0
          %s234 = sshll.u32 %s3, 4
          %s235 = int_to_ptr.hbm [resolvable:$true] %s234
          %s236 = sshll.u32 [#allocation10], 4
          %s237 = int_to_ptr.vmem [resolvable:$true] %s236
          %242 = dma.hbm_to_vmem [thread:$0]  %s235, 3072, %s237, [#allocation11], 192, 192, 12
        $region24: #{tpu_custom_call.1} parent=11 // pred_fallthru
          _
        // Predicated region
        $region25: #{tpu_custom_call.1} parent=11 // pred_check
          %p243 = pneg %p134
        $region26: #{tpu_custom_call.1} parent=11 // pred_check_branch
          %245 = sbr.rel (%p243) target = $region28
        $region27: #{tpu_custom_call.1} parent=11 // pred_region
          %247 = vsyncadd [#allocation11], 0
          %s248 = sshll.u32 %s4, 4
          %s249 = int_to_ptr.hbm [resolvable:$true] %s248
          %s250 = sshll.u32 [#allocation12], 4
          %s251 = int_to_ptr.vmem [resolvable:$true] %s250
          %256 = dma.hbm_to_vmem [thread:$0]  %s249, 1024, %s251, [#allocation11], 64, 64, 4
        $region28: #{tpu_custom_call.1} parent=11 // pred_fallthru
          _
      $region12: #{tpu_custom_call.1} parent=5 // pred_fallthru
        _
      %p257 = scmp.lt.s32.totalorder %s24, 2
      // Predicated region
      $region29: #{tpu_custom_call.1} parent=5 // pred_check
        %p258 = pneg %p257
      $region30: #{tpu_custom_call.1} parent=5 // pred_check_branch
        %260 = sbr.rel (%p258) target = $region32
      $region31: #{tpu_custom_call.1} parent=5 // pred_region
        // Predicated region
        $region33: #{tpu_custom_call.1} parent=31 // pred_check
          %p261 = pneg %p65
        $region34: #{tpu_custom_call.1} parent=31 // pred_check_branch
          %263 = sbr.rel (%p261) target = $region36
        $region35: #{tpu_custom_call.1} parent=31 // pred_region
          %s264 = sand.u32 %s24, 1
          %s265 = scalar_lea.sflag [#allocation8], %s264
          %s266 = sand.u32 %s55, 1
          %s267 = smul.addr %s266, 64
          %s268 = scalar_lea.vmem [#allocation7], %s267
          %s269 = smul.u32 8, %s24
          %271 = vsyncadd %s265, 0
          %s272 = smul.addr %s269, 2
          %s273 = smul.addr %s272, 4
          %s274 = scalar_lea.hbm %s1, %s273
          %s275 = sshll.u32 %s274, 4
          %s276 = int_to_ptr.hbm [resolvable:$true] %s275
          %s277 = sshll.u32 %s268, 4
          %s278 = int_to_ptr.vmem [resolvable:$true] %s277
          %283 = dma.hbm_to_vmem [thread:$0]  %s276, 1024, %s278, %s265, 64, 64, 4
        $region36: #{tpu_custom_call.1} parent=31 // pred_fallthru
          _
      $region32: #{tpu_custom_call.1} parent=5 // pred_fallthru
        _
      %p284 = scmp.le.s32.totalorder 1, %s24
      %p285 = scmp.lt.s32.totalorder %s24, 3
      %p286 = pnand %p284, %p285
      %p287 = pneg %p286
      // Predicated region
      $region37: #{tpu_custom_call.1} parent=5 // pred_check
        _
      $region38: #{tpu_custom_call.1} parent=5 // pred_check_branch
        %289 = sbr.rel (%p286) target = $region40
      $region39: #{tpu_custom_call.1} parent=5 // pred_region
        %s290 = ssub.s32 %s24, 1
        // Predicated region
        $region41: #{tpu_custom_call.1} parent=39 // pred_check
          %p291 = pneg %p45
        $region42: #{tpu_custom_call.1} parent=39 // pred_check_branch
          %293 = sbr.rel (%p291) target = $region44
        $region43: #{tpu_custom_call.1} parent=39 // pred_region
          %295 = dma.done [#allocation5], 256
        $region44: #{tpu_custom_call.1} parent=39 // pred_fallthru
          _
        %s296 = sand.u32 %s29, 1
        %s297 = scalar_lea.sflag [#allocation8], %s296
        %s298 = sand.u32 %s58, 1
        %s299 = smul.addr %s298, 64
        %s300 = scalar_lea.vmem [#allocation7], %s299
        // Predicated region
        $region45: #{tpu_custom_call.1} parent=39 // pred_check
          %p301 = pneg %p71
        $region46: #{tpu_custom_call.1} parent=39 // pred_check_branch
          %303 = sbr.rel (%p301) target = $region48
        $region47: #{tpu_custom_call.1} parent=39 // pred_region
          %305 = dma.done %s297, 1024
        $region48: #{tpu_custom_call.1} parent=39 // pred_fallthru
          _
        // Predicated region
        $region49: #{tpu_custom_call.1} parent=39 // pred_check
          %p306 = pneg %p92
        $region50: #{tpu_custom_call.1} parent=39 // pred_check_branch
          %308 = sbr.rel (%p306) target = $region52
        $region51: #{tpu_custom_call.1} parent=39 // pred_region
          %310 = dma.done [#allocation8], 192
        $region52: #{tpu_custom_call.1} parent=39 // pred_fallthru
          _
        // Predicated region
        $region53: #{tpu_custom_call.1} parent=39 // pred_check
          %p311 = pneg %p113
        $region54: #{tpu_custom_call.1} parent=39 // pred_check_branch
          %313 = sbr.rel (%p311) target = $region56
        $region55: #{tpu_custom_call.1} parent=39 // pred_region
          %315 = dma.done [#allocation11], 3072
        $region56: #{tpu_custom_call.1} parent=39 // pred_fallthru
          _
        // Predicated region
        $region57: #{tpu_custom_call.1} parent=39 // pred_check
          %p316 = pneg %p134
        $region58: #{tpu_custom_call.1} parent=39 // pred_check_branch
          %318 = sbr.rel (%p316) target = $region60
        $region59: #{tpu_custom_call.1} parent=39 // pred_region
          %320 = dma.done [#allocation11], 1024
        $region60: #{tpu_custom_call.1} parent=39 // pred_fallthru
          _
        %p321 = pneg %p45
        %p322 = pneg %p42
        %s323 = sand.u32 %s29, 1
        %s324 = scalar_lea.sflag [#allocation8], %s323
        %s325 = sand.u32 %s58, 1
        %s326 = smul.addr %s325, 64
        %s327 = scalar_lea.vmem [#allocation7], %s326
        %p328 = pneg %p71
        %p329 = pneg %p68
        %p330 = pneg %p92
        %p331 = pneg %p89
        %p332 = pneg %p113
        %p333 = pneg %p110
        %p334 = pneg %p134
        %p335 = pneg %p131
        %p336 = pneg %p160
        %p337 = pneg %p157
        %s338 = sand.u32 %s147, 1
        %s339 = scalar_lea.sflag [#allocation6], %s338
        %s340 = sand.u32 %s147, 1
        %s341 = smul.addr %s340, 128
        %s342 = scalar_lea.vmem [#allocation13], %s341
        %p343 = pneg %p186
        %p344 = pneg %p183
        %s345 = sand.u32 %s173, 1
        %s346 = scalar_lea.sflag [#allocation15], %s345
        %s347 = sand.u32 %s173, 1
        %s348 = smul.addr %s347, 128
        %s349 = scalar_lea.vmem [#allocation14], %s348
        %s350 = smul.u32 8, %s29
        %s351 = smul.u32 8, %s29
        %s352 = smul.u32 8, %s29
        %p354 = scmp.eq.s32.totalorder %s29, 0
        // Predicated region
        $region61: #{tpu_custom_call.1} parent=39 // pred_check
          %p355 = pneg %p354
        $region62: #{tpu_custom_call.1} parent=39 // pred_check_branch
          %357 = sbr.rel (%p355) target = $region64
        $region63: #{tpu_custom_call.1} parent=39 // pred_region
          %v358 = vld [vmem:[#allocation4] sm:$0xff]
          %v359 = vld [vmem:[#allocation4 + $0x8] sm:$0xff]
          %360 = vst [vmem:[#allocation2] sm:$0xff] %v358
          %361 = vst [vmem:[#allocation2 + $0x8] sm:$0xff] %v359
          %v362 = vld [vmem:[#allocation4] sm:$0xff]
          %v363 = vld [vmem:[#allocation4 + $0x8] sm:$0xff]
          %v364 = vtanh.pop %v362
          %v365 = vtanh.pop %v363
          %v366 = vpack.c.bf16 %v364, %v364
          %v367 = vpack.c.bf16 %v365, %v365
          %368 = vst [vmem:[#allocation3] sm:$0xf] %v366
          %369 = vst [vmem:[#allocation3 + $0x4] sm:$0xf] %v367
        $region64: #{tpu_custom_call.1} parent=39 // pred_fallthru
          _
        %v370 = vld [vmem:[#allocation9] sm:$0xf]
        %v371 = vld [vmem:[#allocation9 + $0x4] sm:$0xf]
        %v372 = vld [vmem:[#allocation9 + $0x8] sm:$0xf]
        %v373 = vld [vmem:[#allocation10] sm:$0xff]
        %v374 = vld [vmem:[#allocation10 + $0x8] sm:$0xf]
        %v375 = vld [vmem:[#allocation10 + $0xc] sm:$0xff]
        %v376 = vld [vmem:[#allocation10 + $0x14] sm:$0xf]
        %v377 = vld [vmem:[#allocation10 + $0x18] sm:$0xff]
        %v378 = vld [vmem:[#allocation10 + $0x20] sm:$0xf]
        %v379 = vld [vmem:[#allocation10 + $0x24] sm:$0xff]
        %v380 = vld [vmem:[#allocation10 + $0x2c] sm:$0xf]
        %v381 = vld [vmem:[#allocation10 + $0x30] sm:$0xff]
        %v382 = vld [vmem:[#allocation10 + $0x38] sm:$0xf]
        %v383 = vld [vmem:[#allocation10 + $0x3c] sm:$0xff]
        %v384 = vld [vmem:[#allocation10 + $0x44] sm:$0xf]
        %v385 = vld [vmem:[#allocation10 + $0x48] sm:$0xff]
        %v386 = vld [vmem:[#allocation10 + $0x50] sm:$0xf]
        %v387 = vld [vmem:[#allocation10 + $0x54] sm:$0xff]
        %v388 = vld [vmem:[#allocation10 + $0x5c] sm:$0xf]
        %v389 = vld [vmem:[#allocation10 + $0x60] sm:$0xff]
        %v390 = vld [vmem:[#allocation10 + $0x68] sm:$0xf]
        %v391 = vld [vmem:[#allocation10 + $0x6c] sm:$0xff]
        %v392 = vld [vmem:[#allocation10 + $0x74] sm:$0xf]
        %v393 = vld [vmem:[#allocation10 + $0x78] sm:$0xff]
        %v394 = vld [vmem:[#allocation10 + $0x80] sm:$0xf]
        %v395 = vld [vmem:[#allocation10 + $0x84] sm:$0xff]
        %v396 = vld [vmem:[#allocation10 + $0x8c] sm:$0xf]
        %v397 = vld [vmem:[#allocation10 + $0x90] sm:$0xff]
        %v398 = vld [vmem:[#allocation10 + $0x98] sm:$0xf]
        %v399 = vld [vmem:[#allocation10 + $0x9c] sm:$0xff]
        %v400 = vld [vmem:[#allocation10 + $0xa4] sm:$0xf]
        %v401 = vld [vmem:[#allocation10 + $0xa8] sm:$0xff]
        %v402 = vld [vmem:[#allocation10 + $0xb0] sm:$0xf]
        %v403 = vld [vmem:[#allocation10 + $0xb4] sm:$0xff]
        %v404 = vld [vmem:[#allocation10 + $0xbc] sm:$0xf]
        %v405 = vld [vmem:[#allocation12] sm:$0xf]
        %v406 = vld [vmem:[#allocation12 + $0x4] sm:$0xf]
        %v407 = vld [vmem:[#allocation12 + $0x8] sm:$0xf]
        %v408 = vld [vmem:[#allocation12 + $0xc] sm:$0xf]
        %v409 = vld [vmem:[#allocation12 + $0x10] sm:$0xf]
        %v410 = vld [vmem:[#allocation12 + $0x14] sm:$0xf]
        %v411 = vld [vmem:[#allocation12 + $0x18] sm:$0xf]
        %v412 = vld [vmem:[#allocation12 + $0x1c] sm:$0xf]
        %v413 = vld [vmem:[#allocation12 + $0x20] sm:$0xf]
        %v414 = vld [vmem:[#allocation12 + $0x24] sm:$0xf]
        %v415 = vld [vmem:[#allocation12 + $0x28] sm:$0xf]
        %v416 = vld [vmem:[#allocation12 + $0x2c] sm:$0xf]
        %v417 = vld [vmem:[#allocation12 + $0x30] sm:$0xf]
        %v418 = vld [vmem:[#allocation12 + $0x34] sm:$0xf]
        %v419 = vld [vmem:[#allocation12 + $0x38] sm:$0xf]
        %v420 = vld [vmem:[#allocation12 + $0x3c] sm:$0xf]
        %v421 = vld [vmem:[#allocation2] sm:$0xff]
        %v422 = vld [vmem:[#allocation2 + $0x8] sm:$0xff]
        %v423 = vld [vmem:[#allocation3] sm:$0xf]
        %v424 = vld [vmem:[#allocation3 + $0x4] sm:$0xf]
        %v425 = vld [vmem:[%s300] sm:$0xf]
        %v426 = vld [vmem:[%s300 + $0x4] sm:$0xf]
        %v429 = vunpack.c.l.b16 %v425
        %v430 = vunpack.c.l.b16 %v426
        %v431 = vpack.c.b16 %v430, %v429
        %v435 = vunpack.c.l.b16 %v370
        %v436 = vunpack.c.l.b16 %v371
        %v437 = vunpack.c.l.b16 %v372
        %v438 = vpack.c.b16 %v436, %v435
        %v439 = vpack.c.b16 %v437, %v437
        %vm441 = vcmask 195584
        %v443 = vsel %vm441, %v431, 0
        %vm445 = vcmask 1043456
        %v447 = vsel %vm445, %v439, 0
        %449 = vmatpush.bf16.msra.mxu0 0
        %450 = vmatpush.bf16.msra.mxu0 0
        %451 = vmatpush.bf16.msra.mxu0 0
        %452 = vmatpush.bf16.msra.mxu0 0
        %453 = vmatpush.bf16.msra.mxu0 0
        %454 = vmatpush.bf16.msra.mxu0 0
        %455 = vmatpush.bf16.msra.mxu0 %v447
        %456 = vmatpush.bf16.msra.mxu0 %v438
        %457 = vmatmul.bf16.gmra.mxu0 %v443
        %v458 = vpop.f32.mrf.mxu0
        %v459 = vadd.f32 0.0, %v458
        %v460 = vpop.f32.mrf.mxu0
        %v461 = vadd.f32 0.0, %v460
        %462 = vdwg.mxu0
        %v465 = vunpack.c.l.b16 %v423
        %v466 = vunpack.c.l.b16 %v424
        %v467 = vpack.c.b16 %v466, %v465
        %v501 = vunpack.c.l.b16 %v373
        %v502 = vunpack.c.h.b16 %v373
        %v503 = vunpack.c.l.b16 %v374
        %v504 = vunpack.c.l.b16 %v375
        %v505 = vunpack.c.h.b16 %v375
        %v506 = vunpack.c.l.b16 %v376
        %v507 = vunpack.c.l.b16 %v377
        %v508 = vunpack.c.h.b16 %v377
        %v509 = vunpack.c.l.b16 %v378
        %v510 = vunpack.c.l.b16 %v379
        %v511 = vunpack.c.h.b16 %v379
        %v512 = vunpack.c.l.b16 %v380
        %v513 = vunpack.c.l.b16 %v381
        %v514 = vunpack.c.h.b16 %v381
        %v515 = vunpack.c.l.b16 %v382
        %v516 = vunpack.c.l.b16 %v383
        %v517 = vunpack.c.h.b16 %v383
        %v518 = vunpack.c.l.b16 %v384
        %v519 = vunpack.c.l.b16 %v385
        %v520 = vunpack.c.h.b16 %v385
        %v521 = vunpack.c.l.b16 %v386
        %v522 = vunpack.c.l.b16 %v387
        %v523 = vunpack.c.h.b16 %v387
        %v524 = vunpack.c.l.b16 %v388
        %v525 = vunpack.c.l.b16 %v389
        %v526 = vunpack.c.h.b16 %v389
        %v527 = vunpack.c.l.b16 %v390
        %v528 = vunpack.c.l.b16 %v391
        %v529 = vunpack.c.h.b16 %v391
        %v530 = vunpack.c.l.b16 %v392
        %v531 = vunpack.c.l.b16 %v393
        %v532 = vunpack.c.h.b16 %v393
        %v533 = vunpack.c.l.b16 %v394
        %v534 = vunpack.c.l.b16 %v395
        %v535 = vunpack.c.h.b16 %v395
        %v536 = vunpack.c.l.b16 %v396
        %v537 = vunpack.c.l.b16 %v397
        %v538 = vunpack.c.h.b16 %v397
        %v539 = vunpack.c.l.b16 %v398
        %v540 = vunpack.c.l.b16 %v399
        %v541 = vunpack.c.h.b16 %v399
        %v542 = vunpack.c.l.b16 %v400
        %v543 = vunpack.c.l.b16 %v401
        %v544 = vunpack.c.h.b16 %v401
        %v545 = vunpack.c.l.b16 %v402
        %v546 = vunpack.c.l.b16 %v403
        %v547 = vunpack.c.h.b16 %v403
        %v548 = vunpack.c.l.b16 %v404
        %v549 = vpack.c.b16 %v504, %v501
        %v550 = vpack.c.b16 %v505, %v502
        %v551 = vpack.c.b16 %v506, %v503
        %v552 = vpack.c.b16 %v510, %v507
        %v553 = vpack.c.b16 %v511, %v508
        %v554 = vpack.c.b16 %v512, %v509
        %v555 = vpack.c.b16 %v516, %v513
        %v556 = vpack.c.b16 %v517, %v514
        %v557 = vpack.c.b16 %v518, %v515
        %v558 = vpack.c.b16 %v522, %v519
        %v559 = vpack.c.b16 %v523, %v520
        %v560 = vpack.c.b16 %v524, %v521
        %v561 = vpack.c.b16 %v528, %v525
        %v562 = vpack.c.b16 %v529, %v526
        %v563 = vpack.c.b16 %v530, %v527
        %v564 = vpack.c.b16 %v534, %v531
        %v565 = vpack.c.b16 %v535, %v532
        %v566 = vpack.c.b16 %v536, %v533
        %v567 = vpack.c.b16 %v540, %v537
        %v568 = vpack.c.b16 %v541, %v538
        %v569 = vpack.c.b16 %v542, %v539
        %v570 = vpack.c.b16 %v546, %v543
        %v571 = vpack.c.b16 %v547, %v544
        %v572 = vpack.c.b16 %v548, %v545
        %597 = vmatpush.bf16.msra.mxu0 %v570
        %598 = vmatpush.bf16.msra.mxu0 %v567
        %599 = vmatpush.bf16.msra.mxu0 %v564
        %600 = vmatpush.bf16.msra.mxu0 %v561
        %601 = vmatpush.bf16.msra.mxu0 %v558
        %602 = vmatpush.bf16.msra.mxu0 %v555
        %603 = vmatpush.bf16.msra.mxu0 %v552
        %604 = vmatpush.bf16.msra.mxu0 %v549
        %605 = vmatmul.bf16.gmra.mxu0 %v467
        %v606 = vpop.f32.mrf.mxu0
        %v607 = vadd.f32 0.0, %v606
        %v608 = vpop.f32.mrf.mxu0
        %v609 = vadd.f32 0.0, %v608
        %610 = vdwg.mxu0
        %611 = vmatpush.bf16.msra.mxu0 %v571
        %612 = vmatpush.bf16.msra.mxu0 %v568
        %613 = vmatpush.bf16.msra.mxu0 %v565
        %614 = vmatpush.bf16.msra.mxu0 %v562
        %615 = vmatpush.bf16.msra.mxu0 %v559
        %616 = vmatpush.bf16.msra.mxu0 %v556
        %617 = vmatpush.bf16.msra.mxu0 %v553
        %618 = vmatpush.bf16.msra.mxu0 %v550
        %619 = vmatmul.bf16.gmra.mxu0 %v467
        %v620 = vpop.f32.mrf.mxu0
        %v621 = vadd.f32 0.0, %v620
        %v622 = vpop.f32.mrf.mxu0
        %v623 = vadd.f32 0.0, %v622
        %624 = vdwg.mxu0
        %625 = vmatpush.bf16.msra.mxu0 %v572
        %626 = vmatpush.bf16.msra.mxu0 %v569
        %627 = vmatpush.bf16.msra.mxu0 %v566
        %628 = vmatpush.bf16.msra.mxu0 %v563
        %629 = vmatpush.bf16.msra.mxu0 %v560
        %630 = vmatpush.bf16.msra.mxu0 %v557
        %631 = vmatpush.bf16.msra.mxu0 %v554
        %632 = vmatpush.bf16.msra.mxu0 %v551
        %633 = vmatmul.bf16.gmra.mxu0 %v467
        %v634 = vpop.f32.mrf.mxu0
        %v635 = vadd.f32 0.0, %v634
        %v636 = vpop.f32.mrf.mxu0
        %v637 = vadd.f32 0.0, %v636
        %638 = vdwg.mxu0
        %v639 = vmax.f32 %v621, 0.0
        %v640 = vmax.f32 %v623, 0.0
        %v641 = vsub.f32 %v635, %v639
        %v642 = vsub.f32 %v637, %v640
        %v643 = vmax.f32 %v641, 0.0
        %v644 = vmax.f32 %v642, 0.0
        %v645 = vpack.c.bf16 %v644, %v643
        %v662 = vunpack.c.l.b16 %v405
        %v663 = vunpack.c.l.b16 %v406
        %v664 = vunpack.c.l.b16 %v407
        %v665 = vunpack.c.l.b16 %v408
        %v666 = vunpack.c.l.b16 %v409
        %v667 = vunpack.c.l.b16 %v410
        %v668 = vunpack.c.l.b16 %v411
        %v669 = vunpack.c.l.b16 %v412
        %v670 = vunpack.c.l.b16 %v413
        %v671 = vunpack.c.l.b16 %v414
        %v672 = vunpack.c.l.b16 %v415
        %v673 = vunpack.c.l.b16 %v416
        %v674 = vunpack.c.l.b16 %v417
        %v675 = vunpack.c.l.b16 %v418
        %v676 = vunpack.c.l.b16 %v419
        %v677 = vunpack.c.l.b16 %v420
        %v678 = vpack.c.b16 %v663, %v662
        %v679 = vpack.c.b16 %v665, %v664
        %v680 = vpack.c.b16 %v667, %v666
        %v681 = vpack.c.b16 %v669, %v668
        %v682 = vpack.c.b16 %v671, %v670
        %v683 = vpack.c.b16 %v673, %v672
        %v684 = vpack.c.b16 %v675, %v674
        %v685 = vpack.c.b16 %v677, %v676
        %694 = vmatpush.bf16.msra.mxu0 %v685
        %695 = vmatpush.bf16.msra.mxu0 %v684
        %696 = vmatpush.bf16.msra.mxu0 %v683
        %697 = vmatpush.bf16.msra.mxu0 %v682
        %698 = vmatpush.bf16.msra.mxu0 %v681
        %699 = vmatpush.bf16.msra.mxu0 %v680
        %700 = vmatpush.bf16.msra.mxu0 %v679
        %701 = vmatpush.bf16.msra.mxu0 %v678
        %702 = vmatmul.bf16.gmra.mxu0 %v645
        %v703 = vpop.f32.mrf.mxu0
        %v704 = vadd.f32 0.0, %v703
        %v705 = vpop.f32.mrf.mxu0
        %v706 = vadd.f32 0.0, %v705
        %707 = vdwg.mxu0
        %v708 = vmul.f32 %v421, 0.6666667
        %v709 = vmul.f32 %v422, 0.6666667
        %v710 = vadd.f32 %v607, %v704
        %v711 = vadd.f32 %v609, %v706
        %v712 = vadd.f32 %v710, %v459
        %v713 = vadd.f32 %v711, %v461
        %v714 = vmul.f32 %v712, 0.33333334
        %v715 = vmul.f32 %v713, 0.33333334
        %v716 = vadd.f32 %v708, %v714
        %v717 = vadd.f32 %v709, %v715
        %v718 = vtanh.pop %v716
        %v719 = vtanh.pop %v717
        %720 = vst [vmem:[%s342] sm:$0xff] %v716
        %721 = vst [vmem:[%s342 + $0x8] sm:$0xff] %v717
        %722 = vst [vmem:[%s349] sm:$0xff] %v718
        %723 = vst [vmem:[%s349 + $0x8] sm:$0xff] %v719
        %v724 = vpack.c.bf16 %v719, %v718
        %s725 = scalar_lea.vmem %s300, 8 [#allocation7]
        %v726 = vld [vmem:[%s725] sm:$0xf]
        %v727 = vld [vmem:[%s725 + $0x4] sm:$0xf]
        %v730 = vunpack.c.l.b16 %v726
        %v731 = vunpack.c.l.b16 %v727
        %v732 = vpack.c.b16 %v731, %v730
        %v734 = vsel %vm441, %v732, 0
        %736 = vmatpush.bf16.msra.mxu0 0
        %737 = vmatpush.bf16.msra.mxu0 0
        %738 = vmatpush.bf16.msra.mxu0 0
        %739 = vmatpush.bf16.msra.mxu0 0
        %740 = vmatpush.bf16.msra.mxu0 0
        %741 = vmatpush.bf16.msra.mxu0 0
        %742 = vmatpush.bf16.msra.mxu0 %v447
        %743 = vmatpush.bf16.msra.mxu0 %v438
        %744 = vmatmul.bf16.gmra.mxu0 %v734
        %v745 = vpop.f32.mrf.mxu0
        %v746 = vadd.f32 0.0, %v745
        %v747 = vpop.f32.mrf.mxu0
        %v748 = vadd.f32 0.0, %v747
        %749 = vdwg.mxu0
        %750 = vmatpush.bf16.msra.mxu0 %v570
        %751 = vmatpush.bf16.msra.mxu0 %v567
        %752 = vmatpush.bf16.msra.mxu0 %v564
        %753 = vmatpush.bf16.msra.mxu0 %v561
        %754 = vmatpush.bf16.msra.mxu0 %v558
        %755 = vmatpush.bf16.msra.mxu0 %v555
        %756 = vmatpush.bf16.msra.mxu0 %v552
        %757 = vmatpush.bf16.msra.mxu0 %v549
        %758 = vmatmul.bf16.gmra.mxu0 %v724
        %v759 = vpop.f32.mrf.mxu0
        %v760 = vadd.f32 0.0, %v759
        %v761 = vpop.f32.mrf.mxu0
        %v762 = vadd.f32 0.0, %v761
        %763 = vdwg.mxu0
        %764 = vmatpush.bf16.msra.mxu0 %v571
        %765 = vmatpush.bf16.msra.mxu0 %v568
        %766 = vmatpush.bf16.msra.mxu0 %v565
        %767 = vmatpush.bf16.msra.mxu0 %v562
        %768 = vmatpush.bf16.msra.mxu0 %v559
        %769 = vmatpush.bf16.msra.mxu0 %v556
        %770 = vmatpush.bf16.msra.mxu0 %v553
        %771 = vmatpush.bf16.msra.mxu0 %v550
        %772 = vmatmul.bf16.gmra.mxu0 %v724
        %v773 = vpop.f32.mrf.mxu0
        %v774 = vadd.f32 0.0, %v773
        %v775 = vpop.f32.mrf.mxu0
        %v776 = vadd.f32 0.0, %v775
        %777 = vdwg.mxu0
        %778 = vmatpush.bf16.msra.mxu0 %v572
        %779 = vmatpush.bf16.msra.mxu0 %v569
        %780 = vmatpush.bf16.msra.mxu0 %v566
        %781 = vmatpush.bf16.msra.mxu0 %v563
        %782 = vmatpush.bf16.msra.mxu0 %v560
        %783 = vmatpush.bf16.msra.mxu0 %v557
        %784 = vmatpush.bf16.msra.mxu0 %v554
        %785 = vmatpush.bf16.msra.mxu0 %v551
        %786 = vmatmul.bf16.gmra.mxu0 %v724
        %v787 = vpop.f32.mrf.mxu0
        %v788 = vadd.f32 0.0, %v787
        %v789 = vpop.f32.mrf.mxu0
        %v790 = vadd.f32 0.0, %v789
        %791 = vdwg.mxu0
        %v792 = vmax.f32 %v774, 0.0
        %v793 = vmax.f32 %v776, 0.0
        %v794 = vsub.f32 %v788, %v792
        %v795 = vsub.f32 %v790, %v793
        %v796 = vmax.f32 %v794, 0.0
        %v797 = vmax.f32 %v795, 0.0
        %v798 = vpack.c.bf16 %v797, %v796
        %799 = vmatpush.bf16.msra.mxu0 %v685
        %800 = vmatpush.bf16.msra.mxu0 %v684
        %801 = vmatpush.bf16.msra.mxu0 %v683
        %802 = vmatpush.bf16.msra.mxu0 %v682
        %803 = vmatpush.bf16.msra.mxu0 %v681
        %804 = vmatpush.bf16.msra.mxu0 %v680
        %805 = vmatpush.bf16.msra.mxu0 %v679
        %806 = vmatpush.bf16.msra.mxu0 %v678
        %807 = vmatmul.bf16.gmra.mxu0 %v798
        %v808 = vpop.f32.mrf.mxu0
        %v809 = vadd.f32 0.0, %v808
        %v810 = vpop.f32.mrf.mxu0
        %v811 = vadd.f32 0.0, %v810
        %812 = vdwg.mxu0
        %v813 = vmul.f32 %v716, 0.6666667
        %v814 = vmul.f32 %v717, 0.6666667
        %v815 = vadd.f32 %v760, %v809
        %v816 = vadd.f32 %v762, %v811
        %v817 = vadd.f32 %v815, %v746
        %v818 = vadd.f32 %v816, %v748
        %v819 = vmul.f32 %v817, 0.33333334
        %v820 = vmul.f32 %v818, 0.33333334
        %v821 = vadd.f32 %v813, %v819
        %v822 = vadd.f32 %v814, %v820
        %v823 = vtanh.pop %v821
        %v824 = vtanh.pop %v822
        %s825 = scalar_lea.vmem %s342, 16 [#allocation13]
        %826 = vst [vmem:[%s825] sm:$0xff] %v821
        %827 = vst [vmem:[%s825 + $0x8] sm:$0xff] %v822
        %s828 = scalar_lea.vmem %s349, 16 [#allocation14]
        %829 = vst [vmem:[%s828] sm:$0xff] %v823
        %830 = vst [vmem:[%s828 + $0x8] sm:$0xff] %v824
        %v831 = vpack.c.bf16 %v824, %v823
        %s832 = scalar_lea.vmem %s300, 16 [#allocation7]
        %v833 = vld [vmem:[%s832] sm:$0xf]
        %v834 = vld [vmem:[%s832 + $0x4] sm:$0xf]
        %v837 = vunpack.c.l.b16 %v833
        %v838 = vunpack.c.l.b16 %v834
        %v839 = vpack.c.b16 %v838, %v837
        %v841 = vsel %vm441, %v839, 0
        %843 = vmatpush.bf16.msra.mxu0 0
        %844 = vmatpush.bf16.msra.mxu0 0
        %845 = vmatpush.bf16.msra.mxu0 0
        %846 = vmatpush.bf16.msra.mxu0 0
        %847 = vmatpush.bf16.msra.mxu0 0
        %848 = vmatpush.bf16.msra.mxu0 0
        %849 = vmatpush.bf16.msra.mxu0 %v447
        %850 = vmatpush.bf16.msra.mxu0 %v438
        %851 = vmatmul.bf16.gmra.mxu0 %v841
        %v852 = vpop.f32.mrf.mxu0
        %v853 = vadd.f32 0.0, %v852
        %v854 = vpop.f32.mrf.mxu0
        %v855 = vadd.f32 0.0, %v854
        %856 = vdwg.mxu0
        %857 = vmatpush.bf16.msra.mxu0 %v570
        %858 = vmatpush.bf16.msra.mxu0 %v567
        %859 = vmatpush.bf16.msra.mxu0 %v564
        %860 = vmatpush.bf16.msra.mxu0 %v561
        %861 = vmatpush.bf16.msra.mxu0 %v558
        %862 = vmatpush.bf16.msra.mxu0 %v555
        %863 = vmatpush.bf16.msra.mxu0 %v552
        %864 = vmatpush.bf16.msra.mxu0 %v549
        %865 = vmatmul.bf16.gmra.mxu0 %v831
        %v866 = vpop.f32.mrf.mxu0
        %v867 = vadd.f32 0.0, %v866
        %v868 = vpop.f32.mrf.mxu0
        %v869 = vadd.f32 0.0, %v868
        %870 = vdwg.mxu0
        %871 = vmatpush.bf16.msra.mxu0 %v571
        %872 = vmatpush.bf16.msra.mxu0 %v568
        %873 = vmatpush.bf16.msra.mxu0 %v565
        %874 = vmatpush.bf16.msra.mxu0 %v562
        %875 = vmatpush.bf16.msra.mxu0 %v559
        %876 = vmatpush.bf16.msra.mxu0 %v556
        %877 = vmatpush.bf16.msra.mxu0 %v553
        %878 = vmatpush.bf16.msra.mxu0 %v550
        %879 = vmatmul.bf16.gmra.mxu0 %v831
        %v880 = vpop.f32.mrf.mxu0
        %v881 = vadd.f32 0.0, %v880
        %v882 = vpop.f32.mrf.mxu0
        %v883 = vadd.f32 0.0, %v882
        %884 = vdwg.mxu0
        %885 = vmatpush.bf16.msra.mxu0 %v572
        %886 = vmatpush.bf16.msra.mxu0 %v569
        %887 = vmatpush.bf16.msra.mxu0 %v566
        %888 = vmatpush.bf16.msra.mxu0 %v563
        %889 = vmatpush.bf16.msra.mxu0 %v560
        %890 = vmatpush.bf16.msra.mxu0 %v557
        %891 = vmatpush.bf16.msra.mxu0 %v554
        %892 = vmatpush.bf16.msra.mxu0 %v551
        %893 = vmatmul.bf16.gmra.mxu0 %v831
        %v894 = vpop.f32.mrf.mxu0
        %v895 = vadd.f32 0.0, %v894
        %v896 = vpop.f32.mrf.mxu0
        %v897 = vadd.f32 0.0, %v896
        %898 = vdwg.mxu0
        %v899 = vmax.f32 %v881, 0.0
        %v900 = vmax.f32 %v883, 0.0
        %v901 = vsub.f32 %v895, %v899
        %v902 = vsub.f32 %v897, %v900
        %v903 = vmax.f32 %v901, 0.0
        %v904 = vmax.f32 %v902, 0.0
        %v905 = vpack.c.bf16 %v904, %v903
        %906 = vmatpush.bf16.msra.mxu0 %v685
        %907 = vmatpush.bf16.msra.mxu0 %v684
        %908 = vmatpush.bf16.msra.mxu0 %v683
        %909 = vmatpush.bf16.msra.mxu0 %v682
        %910 = vmatpush.bf16.msra.mxu0 %v681
        %911 = vmatpush.bf16.msra.mxu0 %v680
        %912 = vmatpush.bf16.msra.mxu0 %v679
        %913 = vmatpush.bf16.msra.mxu0 %v678
        %914 = vmatmul.bf16.gmra.mxu0 %v905
        %v915 = vpop.f32.mrf.mxu0
        %v916 = vadd.f32 0.0, %v915
        %v917 = vpop.f32.mrf.mxu0
        %v918 = vadd.f32 0.0, %v917
        %919 = vdwg.mxu0
        %v920 = vmul.f32 %v821, 0.6666667
        %v921 = vmul.f32 %v822, 0.6666667
        %v922 = vadd.f32 %v867, %v916
        %v923 = vadd.f32 %v869, %v918
        %v924 = vadd.f32 %v922, %v853
        %v925 = vadd.f32 %v923, %v855
        %v926 = vmul.f32 %v924, 0.33333334
        %v927 = vmul.f32 %v925, 0.33333334
        %v928 = vadd.f32 %v920, %v926
        %v929 = vadd.f32 %v921, %v927
        %v930 = vtanh.pop %v928
        %v931 = vtanh.pop %v929
        %s932 = scalar_lea.vmem %s342, 32 [#allocation13]
        %933 = vst [vmem:[%s932] sm:$0xff] %v928
        %934 = vst [vmem:[%s932 + $0x8] sm:$0xff] %v929
        %s935 = scalar_lea.vmem %s349, 32 [#allocation14]
        %936 = vst [vmem:[%s935] sm:$0xff] %v930
        %937 = vst [vmem:[%s935 + $0x8] sm:$0xff] %v931
        %v938 = vpack.c.bf16 %v931, %v930
        %s939 = scalar_lea.vmem %s300, 24 [#allocation7]
        %v940 = vld [vmem:[%s939] sm:$0xf]
        %v941 = vld [vmem:[%s939 + $0x4] sm:$0xf]
        %v944 = vunpack.c.l.b16 %v940
        %v945 = vunpack.c.l.b16 %v941
        %v946 = vpack.c.b16 %v945, %v944
        %v948 = vsel %vm441, %v946, 0
        %950 = vmatpush.bf16.msra.mxu0 0
        %951 = vmatpush.bf16.msra.mxu0 0
        %952 = vmatpush.bf16.msra.mxu0 0
        %953 = vmatpush.bf16.msra.mxu0 0
        %954 = vmatpush.bf16.msra.mxu0 0
        %955 = vmatpush.bf16.msra.mxu0 0
        %956 = vmatpush.bf16.msra.mxu0 %v447
        %957 = vmatpush.bf16.msra.mxu0 %v438
        %958 = vmatmul.bf16.gmra.mxu0 %v948
        %v959 = vpop.f32.mrf.mxu0
        %v960 = vadd.f32 0.0, %v959
        %v961 = vpop.f32.mrf.mxu0
        %v962 = vadd.f32 0.0, %v961
        %963 = vdwg.mxu0
        %964 = vmatpush.bf16.msra.mxu0 %v570
        %965 = vmatpush.bf16.msra.mxu0 %v567
        %966 = vmatpush.bf16.msra.mxu0 %v564
        %967 = vmatpush.bf16.msra.mxu0 %v561
        %968 = vmatpush.bf16.msra.mxu0 %v558
        %969 = vmatpush.bf16.msra.mxu0 %v555
        %970 = vmatpush.bf16.msra.mxu0 %v552
        %971 = vmatpush.bf16.msra.mxu0 %v549
        %972 = vmatmul.bf16.gmra.mxu0 %v938
        %v973 = vpop.f32.mrf.mxu0
        %v974 = vadd.f32 0.0, %v973
        %v975 = vpop.f32.mrf.mxu0
        %v976 = vadd.f32 0.0, %v975
        %977 = vdwg.mxu0
        %978 = vmatpush.bf16.msra.mxu0 %v571
        %979 = vmatpush.bf16.msra.mxu0 %v568
        %980 = vmatpush.bf16.msra.mxu0 %v565
        %981 = vmatpush.bf16.msra.mxu0 %v562
        %982 = vmatpush.bf16.msra.mxu0 %v559
        %983 = vmatpush.bf16.msra.mxu0 %v556
        %984 = vmatpush.bf16.msra.mxu0 %v553
        %985 = vmatpush.bf16.msra.mxu0 %v550
        %986 = vmatmul.bf16.gmra.mxu0 %v938
        %v987 = vpop.f32.mrf.mxu0
        %v988 = vadd.f32 0.0, %v987
        %v989 = vpop.f32.mrf.mxu0
        %v990 = vadd.f32 0.0, %v989
        %991 = vdwg.mxu0
        %992 = vmatpush.bf16.msra.mxu0 %v572
        %993 = vmatpush.bf16.msra.mxu0 %v569
        %994 = vmatpush.bf16.msra.mxu0 %v566
        %995 = vmatpush.bf16.msra.mxu0 %v563
        %996 = vmatpush.bf16.msra.mxu0 %v560
        %997 = vmatpush.bf16.msra.mxu0 %v557
        %998 = vmatpush.bf16.msra.mxu0 %v554
        %999 = vmatpush.bf16.msra.mxu0 %v551
        %1000 = vmatmul.bf16.gmra.mxu0 %v938
        %v1001 = vpop.f32.mrf.mxu0
        %v1002 = vadd.f32 0.0, %v1001
        %v1003 = vpop.f32.mrf.mxu0
        %v1004 = vadd.f32 0.0, %v1003
        %1005 = vdwg.mxu0
        %v1006 = vmax.f32 %v988, 0.0
        %v1007 = vmax.f32 %v990, 0.0
        %v1008 = vsub.f32 %v1002, %v1006
        %v1009 = vsub.f32 %v1004, %v1007
        %v1010 = vmax.f32 %v1008, 0.0
        %v1011 = vmax.f32 %v1009, 0.0
        %v1012 = vpack.c.bf16 %v1011, %v1010
        %1013 = vmatpush.bf16.msra.mxu0 %v685
        %1014 = vmatpush.bf16.msra.mxu0 %v684
        %1015 = vmatpush.bf16.msra.mxu0 %v683
        %1016 = vmatpush.bf16.msra.mxu0 %v682
        %1017 = vmatpush.bf16.msra.mxu0 %v681
        %1018 = vmatpush.bf16.msra.mxu0 %v680
        %1019 = vmatpush.bf16.msra.mxu0 %v679
        %1020 = vmatpush.bf16.msra.mxu0 %v678
        %1021 = vmatmul.bf16.gmra.mxu0 %v1012
        %v1022 = vpop.f32.mrf.mxu0
        %v1023 = vadd.f32 0.0, %v1022
        %v1024 = vpop.f32.mrf.mxu0
        %v1025 = vadd.f32 0.0, %v1024
        %1026 = vdwg.mxu0
        %v1027 = vmul.f32 %v928, 0.6666667
        %v1028 = vmul.f32 %v929, 0.6666667
        %v1029 = vadd.f32 %v974, %v1023
        %v1030 = vadd.f32 %v976, %v1025
        %v1031 = vadd.f32 %v1029, %v960
        %v1032 = vadd.f32 %v1030, %v962
        %v1033 = vmul.f32 %v1031, 0.33333334
        %v1034 = vmul.f32 %v1032, 0.33333334
        %v1035 = vadd.f32 %v1027, %v1033
        %v1036 = vadd.f32 %v1028, %v1034
        %v1037 = vtanh.pop %v1035
        %v1038 = vtanh.pop %v1036
        %s1039 = scalar_lea.vmem %s342, 48 [#allocation13]
        %1040 = vst [vmem:[%s1039] sm:$0xff] %v1035
        %1041 = vst [vmem:[%s1039 + $0x8] sm:$0xff] %v1036
        %s1042 = scalar_lea.vmem %s349, 48 [#allocation14]
        %1043 = vst [vmem:[%s1042] sm:$0xff] %v1037
        %1044 = vst [vmem:[%s1042 + $0x8] sm:$0xff] %v1038
        %v1045 = vpack.c.bf16 %v1038, %v1037
        %s1046 = scalar_lea.vmem %s300, 32 [#allocation7]
        %v1047 = vld [vmem:[%s1046] sm:$0xf]
        %v1048 = vld [vmem:[%s1046 + $0x4] sm:$0xf]
        %v1051 = vunpack.c.l.b16 %v1047
        %v1052 = vunpack.c.l.b16 %v1048
        %v1053 = vpack.c.b16 %v1052, %v1051
        %v1055 = vsel %vm441, %v1053, 0
        %1057 = vmatpush.bf16.msra.mxu0 0
        %1058 = vmatpush.bf16.msra.mxu0 0
        %1059 = vmatpush.bf16.msra.mxu0 0
        %1060 = vmatpush.bf16.msra.mxu0 0
        %1061 = vmatpush.bf16.msra.mxu0 0
        %1062 = vmatpush.bf16.msra.mxu0 0
        %1063 = vmatpush.bf16.msra.mxu0 %v447
        %1064 = vmatpush.bf16.msra.mxu0 %v438
        %1065 = vmatmul.bf16.gmra.mxu0 %v1055
        %v1066 = vpop.f32.mrf.mxu0
        %v1067 = vadd.f32 0.0, %v1066
        %v1068 = vpop.f32.mrf.mxu0
        %v1069 = vadd.f32 0.0, %v1068
        %1070 = vdwg.mxu0
        %1071 = vmatpush.bf16.msra.mxu0 %v570
        %1072 = vmatpush.bf16.msra.mxu0 %v567
        %1073 = vmatpush.bf16.msra.mxu0 %v564
        %1074 = vmatpush.bf16.msra.mxu0 %v561
        %1075 = vmatpush.bf16.msra.mxu0 %v558
        %1076 = vmatpush.bf16.msra.mxu0 %v555
        %1077 = vmatpush.bf16.msra.mxu0 %v552
        %1078 = vmatpush.bf16.msra.mxu0 %v549
        %1079 = vmatmul.bf16.gmra.mxu0 %v1045
        %v1080 = vpop.f32.mrf.mxu0
        %v1081 = vadd.f32 0.0, %v1080
        %v1082 = vpop.f32.mrf.mxu0
        %v1083 = vadd.f32 0.0, %v1082
        %1084 = vdwg.mxu0
        %1085 = vmatpush.bf16.msra.mxu0 %v571
        %1086 = vmatpush.bf16.msra.mxu0 %v568
        %1087 = vmatpush.bf16.msra.mxu0 %v565
        %1088 = vmatpush.bf16.msra.mxu0 %v562
        %1089 = vmatpush.bf16.msra.mxu0 %v559
        %1090 = vmatpush.bf16.msra.mxu0 %v556
        %1091 = vmatpush.bf16.msra.mxu0 %v553
        %1092 = vmatpush.bf16.msra.mxu0 %v550
        %1093 = vmatmul.bf16.gmra.mxu0 %v1045
        %v1094 = vpop.f32.mrf.mxu0
        %v1095 = vadd.f32 0.0, %v1094
        %v1096 = vpop.f32.mrf.mxu0
        %v1097 = vadd.f32 0.0, %v1096
        %1098 = vdwg.mxu0
        %1099 = vmatpush.bf16.msra.mxu0 %v572
        %1100 = vmatpush.bf16.msra.mxu0 %v569
        %1101 = vmatpush.bf16.msra.mxu0 %v566
        %1102 = vmatpush.bf16.msra.mxu0 %v563
        %1103 = vmatpush.bf16.msra.mxu0 %v560
        %1104 = vmatpush.bf16.msra.mxu0 %v557
        %1105 = vmatpush.bf16.msra.mxu0 %v554
        %1106 = vmatpush.bf16.msra.mxu0 %v551
        %1107 = vmatmul.bf16.gmra.mxu0 %v1045
        %v1108 = vpop.f32.mrf.mxu0
        %v1109 = vadd.f32 0.0, %v1108
        %v1110 = vpop.f32.mrf.mxu0
        %v1111 = vadd.f32 0.0, %v1110
        %1112 = vdwg.mxu0
        %v1113 = vmax.f32 %v1095, 0.0
        %v1114 = vmax.f32 %v1097, 0.0
        %v1115 = vsub.f32 %v1109, %v1113
        %v1116 = vsub.f32 %v1111, %v1114
        %v1117 = vmax.f32 %v1115, 0.0
        %v1118 = vmax.f32 %v1116, 0.0
        %v1119 = vpack.c.bf16 %v1118, %v1117
        %1120 = vmatpush.bf16.msra.mxu0 %v685
        %1121 = vmatpush.bf16.msra.mxu0 %v684
        %1122 = vmatpush.bf16.msra.mxu0 %v683
        %1123 = vmatpush.bf16.msra.mxu0 %v682
        %1124 = vmatpush.bf16.msra.mxu0 %v681
        %1125 = vmatpush.bf16.msra.mxu0 %v680
        %1126 = vmatpush.bf16.msra.mxu0 %v679
        %1127 = vmatpush.bf16.msra.mxu0 %v678
        %1128 = vmatmul.bf16.gmra.mxu0 %v1119
        %v1129 = vpop.f32.mrf.mxu0
        %v1130 = vadd.f32 0.0, %v1129
        %v1131 = vpop.f32.mrf.mxu0
        %v1132 = vadd.f32 0.0, %v1131
        %1133 = vdwg.mxu0
        %v1134 = vmul.f32 %v1035, 0.6666667
        %v1135 = vmul.f32 %v1036, 0.6666667
        %v1136 = vadd.f32 %v1081, %v1130
        %v1137 = vadd.f32 %v1083, %v1132
        %v1138 = vadd.f32 %v1136, %v1067
        %v1139 = vadd.f32 %v1137, %v1069
        %v1140 = vmul.f32 %v1138, 0.33333334
        %v1141 = vmul.f32 %v1139, 0.33333334
        %v1142 = vadd.f32 %v1134, %v1140
        %v1143 = vadd.f32 %v1135, %v1141
        %v1144 = vtanh.pop %v1142
        %v1145 = vtanh.pop %v1143
        %s1146 = scalar_lea.vmem %s342, 64 [#allocation13]
        %1147 = vst [vmem:[%s1146] sm:$0xff] %v1142
        %1148 = vst [vmem:[%s1146 + $0x8] sm:$0xff] %v1143
        %s1149 = scalar_lea.vmem %s349, 64 [#allocation14]
        %1150 = vst [vmem:[%s1149] sm:$0xff] %v1144
        %1151 = vst [vmem:[%s1149 + $0x8] sm:$0xff] %v1145
        %v1152 = vpack.c.bf16 %v1145, %v1144
        %s1153 = scalar_lea.vmem %s300, 40 [#allocation7]
        %v1154 = vld [vmem:[%s1153] sm:$0xf]
        %v1155 = vld [vmem:[%s1153 + $0x4] sm:$0xf]
        %v1158 = vunpack.c.l.b16 %v1154
        %v1159 = vunpack.c.l.b16 %v1155
        %v1160 = vpack.c.b16 %v1159, %v1158
        %v1162 = vsel %vm441, %v1160, 0
        %1164 = vmatpush.bf16.msra.mxu0 0
        %1165 = vmatpush.bf16.msra.mxu0 0
        %1166 = vmatpush.bf16.msra.mxu0 0
        %1167 = vmatpush.bf16.msra.mxu0 0
        %1168 = vmatpush.bf16.msra.mxu0 0
        %1169 = vmatpush.bf16.msra.mxu0 0
        %1170 = vmatpush.bf16.msra.mxu0 %v447
        %1171 = vmatpush.bf16.msra.mxu0 %v438
        %1172 = vmatmul.bf16.gmra.mxu0 %v1162
        %v1173 = vpop.f32.mrf.mxu0
        %v1174 = vadd.f32 0.0, %v1173
        %v1175 = vpop.f32.mrf.mxu0
        %v1176 = vadd.f32 0.0, %v1175
        %1177 = vdwg.mxu0
        %1178 = vmatpush.bf16.msra.mxu0 %v570
        %1179 = vmatpush.bf16.msra.mxu0 %v567
        %1180 = vmatpush.bf16.msra.mxu0 %v564
        %1181 = vmatpush.bf16.msra.mxu0 %v561
        %1182 = vmatpush.bf16.msra.mxu0 %v558
        %1183 = vmatpush.bf16.msra.mxu0 %v555
        %1184 = vmatpush.bf16.msra.mxu0 %v552
        %1185 = vmatpush.bf16.msra.mxu0 %v549
        %1186 = vmatmul.bf16.gmra.mxu0 %v1152
        %v1187 = vpop.f32.mrf.mxu0
        %v1188 = vadd.f32 0.0, %v1187
        %v1189 = vpop.f32.mrf.mxu0
        %v1190 = vadd.f32 0.0, %v1189
        %1191 = vdwg.mxu0
        %1192 = vmatpush.bf16.msra.mxu0 %v571
        %1193 = vmatpush.bf16.msra.mxu0 %v568
        %1194 = vmatpush.bf16.msra.mxu0 %v565
        %1195 = vmatpush.bf16.msra.mxu0 %v562
        %1196 = vmatpush.bf16.msra.mxu0 %v559
        %1197 = vmatpush.bf16.msra.mxu0 %v556
        %1198 = vmatpush.bf16.msra.mxu0 %v553
        %1199 = vmatpush.bf16.msra.mxu0 %v550
        %1200 = vmatmul.bf16.gmra.mxu0 %v1152
        %v1201 = vpop.f32.mrf.mxu0
        %v1202 = vadd.f32 0.0, %v1201
        %v1203 = vpop.f32.mrf.mxu0
        %v1204 = vadd.f32 0.0, %v1203
        %1205 = vdwg.mxu0
        %1206 = vmatpush.bf16.msra.mxu0 %v572
        %1207 = vmatpush.bf16.msra.mxu0 %v569
        %1208 = vmatpush.bf16.msra.mxu0 %v566
        %1209 = vmatpush.bf16.msra.mxu0 %v563
        %1210 = vmatpush.bf16.msra.mxu0 %v560
        %1211 = vmatpush.bf16.msra.mxu0 %v557
        %1212 = vmatpush.bf16.msra.mxu0 %v554
        %1213 = vmatpush.bf16.msra.mxu0 %v551
        %1214 = vmatmul.bf16.gmra.mxu0 %v1152
        %v1215 = vpop.f32.mrf.mxu0
        %v1216 = vadd.f32 0.0, %v1215
        %v1217 = vpop.f32.mrf.mxu0
        %v1218 = vadd.f32 0.0, %v1217
        %1219 = vdwg.mxu0
        %v1220 = vmax.f32 %v1202, 0.0
        %v1221 = vmax.f32 %v1204, 0.0
        %v1222 = vsub.f32 %v1216, %v1220
        %v1223 = vsub.f32 %v1218, %v1221
        %v1224 = vmax.f32 %v1222, 0.0
        %v1225 = vmax.f32 %v1223, 0.0
        %v1226 = vpack.c.bf16 %v1225, %v1224
        %1227 = vmatpush.bf16.msra.mxu0 %v685
        %1228 = vmatpush.bf16.msra.mxu0 %v684
        %1229 = vmatpush.bf16.msra.mxu0 %v683
        %1230 = vmatpush.bf16.msra.mxu0 %v682
        %1231 = vmatpush.bf16.msra.mxu0 %v681
        %1232 = vmatpush.bf16.msra.mxu0 %v680
        %1233 = vmatpush.bf16.msra.mxu0 %v679
        %1234 = vmatpush.bf16.msra.mxu0 %v678
        %1235 = vmatmul.bf16.gmra.mxu0 %v1226
        %v1236 = vpop.f32.mrf.mxu0
        %v1237 = vadd.f32 0.0, %v1236
        %v1238 = vpop.f32.mrf.mxu0
        %v1239 = vadd.f32 0.0, %v1238
        %1240 = vdwg.mxu0
        %v1241 = vmul.f32 %v1142, 0.6666667
        %v1242 = vmul.f32 %v1143, 0.6666667
        %v1243 = vadd.f32 %v1188, %v1237
        %v1244 = vadd.f32 %v1190, %v1239
        %v1245 = vadd.f32 %v1243, %v1174
        %v1246 = vadd.f32 %v1244, %v1176
        %v1247 = vmul.f32 %v1245, 0.33333334
        %v1248 = vmul.f32 %v1246, 0.33333334
        %v1249 = vadd.f32 %v1241, %v1247
        %v1250 = vadd.f32 %v1242, %v1248
        %v1251 = vtanh.pop %v1249
        %v1252 = vtanh.pop %v1250
        %s1253 = scalar_lea.vmem %s342, 80 [#allocation13]
        %1254 = vst [vmem:[%s1253] sm:$0xff] %v1249
        %1255 = vst [vmem:[%s1253 + $0x8] sm:$0xff] %v1250
        %s1256 = scalar_lea.vmem %s349, 80 [#allocation14]
        %1257 = vst [vmem:[%s1256] sm:$0xff] %v1251
        %1258 = vst [vmem:[%s1256 + $0x8] sm:$0xff] %v1252
        %v1259 = vpack.c.bf16 %v1252, %v1251
        %s1260 = scalar_lea.vmem %s300, 48 [#allocation7]
        %v1261 = vld [vmem:[%s1260] sm:$0xf]
        %v1262 = vld [vmem:[%s1260 + $0x4] sm:$0xf]
        %v1265 = vunpack.c.l.b16 %v1261
        %v1266 = vunpack.c.l.b16 %v1262
        %v1267 = vpack.c.b16 %v1266, %v1265
        %v1269 = vsel %vm441, %v1267, 0
        %1271 = vmatpush.bf16.msra.mxu0 0
        %1272 = vmatpush.bf16.msra.mxu0 0
        %1273 = vmatpush.bf16.msra.mxu0 0
        %1274 = vmatpush.bf16.msra.mxu0 0
        %1275 = vmatpush.bf16.msra.mxu0 0
        %1276 = vmatpush.bf16.msra.mxu0 0
        %1277 = vmatpush.bf16.msra.mxu0 %v447
        %1278 = vmatpush.bf16.msra.mxu0 %v438
        %1279 = vmatmul.bf16.gmra.mxu0 %v1269
        %v1280 = vpop.f32.mrf.mxu0
        %v1281 = vadd.f32 0.0, %v1280
        %v1282 = vpop.f32.mrf.mxu0
        %v1283 = vadd.f32 0.0, %v1282
        %1284 = vdwg.mxu0
        %1285 = vmatpush.bf16.msra.mxu0 %v570
        %1286 = vmatpush.bf16.msra.mxu0 %v567
        %1287 = vmatpush.bf16.msra.mxu0 %v564
        %1288 = vmatpush.bf16.msra.mxu0 %v561
        %1289 = vmatpush.bf16.msra.mxu0 %v558
        %1290 = vmatpush.bf16.msra.mxu0 %v555
        %1291 = vmatpush.bf16.msra.mxu0 %v552
        %1292 = vmatpush.bf16.msra.mxu0 %v549
        %1293 = vmatmul.bf16.gmra.mxu0 %v1259
        %v1294 = vpop.f32.mrf.mxu0
        %v1295 = vadd.f32 0.0, %v1294
        %v1296 = vpop.f32.mrf.mxu0
        %v1297 = vadd.f32 0.0, %v1296
        %1298 = vdwg.mxu0
        %1299 = vmatpush.bf16.msra.mxu0 %v571
        %1300 = vmatpush.bf16.msra.mxu0 %v568
        %1301 = vmatpush.bf16.msra.mxu0 %v565
        %1302 = vmatpush.bf16.msra.mxu0 %v562
        %1303 = vmatpush.bf16.msra.mxu0 %v559
        %1304 = vmatpush.bf16.msra.mxu0 %v556
        %1305 = vmatpush.bf16.msra.mxu0 %v553
        %1306 = vmatpush.bf16.msra.mxu0 %v550
        %1307 = vmatmul.bf16.gmra.mxu0 %v1259
        %v1308 = vpop.f32.mrf.mxu0
        %v1309 = vadd.f32 0.0, %v1308
        %v1310 = vpop.f32.mrf.mxu0
        %v1311 = vadd.f32 0.0, %v1310
        %1312 = vdwg.mxu0
        %1313 = vmatpush.bf16.msra.mxu0 %v572
        %1314 = vmatpush.bf16.msra.mxu0 %v569
        %1315 = vmatpush.bf16.msra.mxu0 %v566
        %1316 = vmatpush.bf16.msra.mxu0 %v563
        %1317 = vmatpush.bf16.msra.mxu0 %v560
        %1318 = vmatpush.bf16.msra.mxu0 %v557
        %1319 = vmatpush.bf16.msra.mxu0 %v554
        %1320 = vmatpush.bf16.msra.mxu0 %v551
        %1321 = vmatmul.bf16.gmra.mxu0 %v1259
        %v1322 = vpop.f32.mrf.mxu0
        %v1323 = vadd.f32 0.0, %v1322
        %v1324 = vpop.f32.mrf.mxu0
        %v1325 = vadd.f32 0.0, %v1324
        %1326 = vdwg.mxu0
        %v1327 = vmax.f32 %v1309, 0.0
        %v1328 = vmax.f32 %v1311, 0.0
        %v1329 = vsub.f32 %v1323, %v1327
        %v1330 = vsub.f32 %v1325, %v1328
        %v1331 = vmax.f32 %v1329, 0.0
        %v1332 = vmax.f32 %v1330, 0.0
        %v1333 = vpack.c.bf16 %v1332, %v1331
        %1334 = vmatpush.bf16.msra.mxu0 %v685
        %1335 = vmatpush.bf16.msra.mxu0 %v684
        %1336 = vmatpush.bf16.msra.mxu0 %v683
        %1337 = vmatpush.bf16.msra.mxu0 %v682
        %1338 = vmatpush.bf16.msra.mxu0 %v681
        %1339 = vmatpush.bf16.msra.mxu0 %v680
        %1340 = vmatpush.bf16.msra.mxu0 %v679
        %1341 = vmatpush.bf16.msra.mxu0 %v678
        %1342 = vmatmul.bf16.gmra.mxu0 %v1333
        %v1343 = vpop.f32.mrf.mxu0
        %v1344 = vadd.f32 0.0, %v1343
        %v1345 = vpop.f32.mrf.mxu0
        %v1346 = vadd.f32 0.0, %v1345
        %1347 = vdwg.mxu0
        %v1348 = vmul.f32 %v1249, 0.6666667
        %v1349 = vmul.f32 %v1250, 0.6666667
        %v1350 = vadd.f32 %v1295, %v1344
        %v1351 = vadd.f32 %v1297, %v1346
        %v1352 = vadd.f32 %v1350, %v1281
        %v1353 = vadd.f32 %v1351, %v1283
        %v1354 = vmul.f32 %v1352, 0.33333334
        %v1355 = vmul.f32 %v1353, 0.33333334
        %v1356 = vadd.f32 %v1348, %v1354
        %v1357 = vadd.f32 %v1349, %v1355
        %v1358 = vtanh.pop %v1356
        %v1359 = vtanh.pop %v1357
        %s1360 = scalar_lea.vmem %s342, 96 [#allocation13]
        %1361 = vst [vmem:[%s1360] sm:$0xff] %v1356
        %1362 = vst [vmem:[%s1360 + $0x8] sm:$0xff] %v1357
        %s1363 = scalar_lea.vmem %s349, 96 [#allocation14]
        %1364 = vst [vmem:[%s1363] sm:$0xff] %v1358
        %1365 = vst [vmem:[%s1363 + $0x8] sm:$0xff] %v1359
        %v1366 = vpack.c.bf16 %v1359, %v1358
        %s1367 = scalar_lea.vmem %s300, 56 [#allocation7]
        %v1368 = vld [vmem:[%s1367] sm:$0xf]
        %v1369 = vld [vmem:[%s1367 + $0x4] sm:$0xf]
        %v1372 = vunpack.c.l.b16 %v1368
        %v1373 = vunpack.c.l.b16 %v1369
        %v1374 = vpack.c.b16 %v1373, %v1372
        %v1376 = vsel %vm441, %v1374, 0
        %1378 = vmatpush.bf16.msra.mxu0 0
        %1379 = vmatpush.bf16.msra.mxu0 0
        %1380 = vmatpush.bf16.msra.mxu0 0
        %1381 = vmatpush.bf16.msra.mxu0 0
        %1382 = vmatpush.bf16.msra.mxu0 0
        %1383 = vmatpush.bf16.msra.mxu0 0
        %1384 = vmatpush.bf16.msra.mxu0 %v447
        %1385 = vmatpush.bf16.msra.mxu0 %v438
        %1386 = vmatmul.bf16.gmra.mxu0 %v1376
        %v1387 = vpop.f32.mrf.mxu0
        %v1388 = vadd.f32 0.0, %v1387
        %v1389 = vpop.f32.mrf.mxu0
        %v1390 = vadd.f32 0.0, %v1389
        %1391 = vdwg.mxu0
        %1392 = vmatpush.bf16.msra.mxu0 %v570
        %1393 = vmatpush.bf16.msra.mxu0 %v567
        %1394 = vmatpush.bf16.msra.mxu0 %v564
        %1395 = vmatpush.bf16.msra.mxu0 %v561
        %1396 = vmatpush.bf16.msra.mxu0 %v558
        %1397 = vmatpush.bf16.msra.mxu0 %v555
        %1398 = vmatpush.bf16.msra.mxu0 %v552
        %1399 = vmatpush.bf16.msra.mxu0 %v549
        %1400 = vmatmul.bf16.gmra.mxu0 %v1366
        %v1401 = vpop.f32.mrf.mxu0
        %v1402 = vadd.f32 0.0, %v1401
        %v1403 = vpop.f32.mrf.mxu0
        %v1404 = vadd.f32 0.0, %v1403
        %1405 = vdwg.mxu0
        %1406 = vmatpush.bf16.msra.mxu0 %v571
        %1407 = vmatpush.bf16.msra.mxu0 %v568
        %1408 = vmatpush.bf16.msra.mxu0 %v565
        %1409 = vmatpush.bf16.msra.mxu0 %v562
        %1410 = vmatpush.bf16.msra.mxu0 %v559
        %1411 = vmatpush.bf16.msra.mxu0 %v556
        %1412 = vmatpush.bf16.msra.mxu0 %v553
        %1413 = vmatpush.bf16.msra.mxu0 %v550
        %1414 = vmatmul.bf16.gmra.mxu0 %v1366
        %v1415 = vpop.f32.mrf.mxu0
        %v1416 = vadd.f32 0.0, %v1415
        %v1417 = vpop.f32.mrf.mxu0
        %v1418 = vadd.f32 0.0, %v1417
        %1419 = vdwg.mxu0
        %1420 = vmatpush.bf16.msra.mxu0 %v572
        %1421 = vmatpush.bf16.msra.mxu0 %v569
        %1422 = vmatpush.bf16.msra.mxu0 %v566
        %1423 = vmatpush.bf16.msra.mxu0 %v563
        %1424 = vmatpush.bf16.msra.mxu0 %v560
        %1425 = vmatpush.bf16.msra.mxu0 %v557
        %1426 = vmatpush.bf16.msra.mxu0 %v554
        %1427 = vmatpush.bf16.msra.mxu0 %v551
        %1428 = vmatmul.bf16.gmra.mxu0 %v1366
        %v1429 = vpop.f32.mrf.mxu0
        %v1430 = vadd.f32 0.0, %v1429
        %v1431 = vpop.f32.mrf.mxu0
        %v1432 = vadd.f32 0.0, %v1431
        %1433 = vdwg.mxu0
        %v1434 = vmax.f32 %v1416, 0.0
        %v1435 = vmax.f32 %v1418, 0.0
        %v1436 = vsub.f32 %v1430, %v1434
        %v1437 = vsub.f32 %v1432, %v1435
        %v1438 = vmax.f32 %v1436, 0.0
        %v1439 = vmax.f32 %v1437, 0.0
        %v1440 = vpack.c.bf16 %v1439, %v1438
        %1441 = vmatpush.bf16.msra.mxu0 %v685
        %1442 = vmatpush.bf16.msra.mxu0 %v684
        %1443 = vmatpush.bf16.msra.mxu0 %v683
        %1444 = vmatpush.bf16.msra.mxu0 %v682
        %1445 = vmatpush.bf16.msra.mxu0 %v681
        %1446 = vmatpush.bf16.msra.mxu0 %v680
        %1447 = vmatpush.bf16.msra.mxu0 %v679
        %1448 = vmatpush.bf16.msra.mxu0 %v678
        %1449 = vmatmul.bf16.gmra.mxu0 %v1440
        %v1450 = vpop.f32.mrf.mxu0
        %v1451 = vadd.f32 0.0, %v1450
        %v1452 = vpop.f32.mrf.mxu0
        %v1453 = vadd.f32 0.0, %v1452
        %1454 = vdwg.mxu0
        %v1455 = vmul.f32 %v1356, 0.6666667
        %v1456 = vmul.f32 %v1357, 0.6666667
        %v1457 = vadd.f32 %v1402, %v1451
        %v1458 = vadd.f32 %v1404, %v1453
        %v1459 = vadd.f32 %v1457, %v1388
        %v1460 = vadd.f32 %v1458, %v1390
        %v1461 = vmul.f32 %v1459, 0.33333334
        %v1462 = vmul.f32 %v1460, 0.33333334
        %v1463 = vadd.f32 %v1455, %v1461
        %v1464 = vadd.f32 %v1456, %v1462
        %v1465 = vtanh.pop %v1463
        %v1466 = vtanh.pop %v1464
        %s1467 = scalar_lea.vmem %s342, 112 [#allocation13]
        %1468 = vst [vmem:[%s1467] sm:$0xff] %v1463
        %1469 = vst [vmem:[%s1467 + $0x8] sm:$0xff] %v1464
        %s1470 = scalar_lea.vmem %s349, 112 [#allocation14]
        %1471 = vst [vmem:[%s1470] sm:$0xff] %v1465
        %1472 = vst [vmem:[%s1470 + $0x8] sm:$0xff] %v1466
        %v1473 = vpack.c.bf16 %v1465, %v1465
        %v1474 = vpack.c.bf16 %v1466, %v1466
        %1475 = vst [vmem:[#allocation2] sm:$0xff] %v1463
        %1476 = vst [vmem:[#allocation2 + $0x8] sm:$0xff] %v1464
        %1477 = vst [vmem:[#allocation3] sm:$0xf] %v1473
        %1478 = vst [vmem:[#allocation3 + $0x4] sm:$0xf] %v1474
        %s1479 = sand.u32 %s147, 1
        %s1480 = scalar_lea.sflag [#allocation6], %s1479
        %s1481 = sand.u32 %s147, 1
        %s1482 = smul.addr %s1481, 128
        %s1483 = scalar_lea.vmem [#allocation13], %s1482
        %s1484 = sand.u32 %s173, 1
        %s1485 = scalar_lea.sflag [#allocation15], %s1484
        %s1486 = sand.u32 %s173, 1
        %s1487 = smul.addr %s1486, 128
        %s1488 = scalar_lea.vmem [#allocation14], %s1487
        // Predicated region
        $region65: #{tpu_custom_call.1} parent=39 // pred_check
          %p1489 = pneg %p157
        $region66: #{tpu_custom_call.1} parent=39 // pred_check_branch
          %1491 = sbr.rel (%p1489) target = $region68
        $region67: #{tpu_custom_call.1} parent=39 // pred_region
          %s1492 = smul.u32 8, %s29
          %1494 = vsyncadd %s1480, 0
          %s1495 = smul.addr %s1492, 2
          %s1496 = smul.addr %s1495, 8
          %s1497 = scalar_lea.hbm %s5, %s1496
          %s1498 = sshll.u32 %s1483, 4
          %s1499 = int_to_ptr.vmem [resolvable:$true] %s1498
          %s1500 = sshll.u32 %s1497, 4
          %s1501 = int_to_ptr.hbm [resolvable:$true] %s1500
          %1506 = dma.vmem_to_hbm [thread:$0]  %s1499, 2048, %s1501, %s1480, 128, 128, 8
        $region68: #{tpu_custom_call.1} parent=39 // pred_fallthru
          _
        // Predicated region
        $region69: #{tpu_custom_call.1} parent=39 // pred_check
          %p1507 = pneg %p183
        $region70: #{tpu_custom_call.1} parent=39 // pred_check_branch
          %1509 = sbr.rel (%p1507) target = $region72
        $region71: #{tpu_custom_call.1} parent=39 // pred_region
          %s1510 = smul.u32 8, %s29
          %1512 = vsyncadd %s1485, 0
          %s1513 = smul.addr %s1510, 2
          %s1514 = smul.addr %s1513, 8
          %s1515 = scalar_lea.hbm %s6, %s1514
          %s1516 = sshll.u32 %s1488, 4
          %s1517 = int_to_ptr.vmem [resolvable:$true] %s1516
          %s1518 = sshll.u32 %s1515, 4
          %s1519 = int_to_ptr.hbm [resolvable:$true] %s1518
          %1524 = dma.vmem_to_hbm [thread:$0]  %s1517, 2048, %s1519, %s1485, 128, 128, 8
        $region72: #{tpu_custom_call.1} parent=39 // pred_fallthru
          _
      $region40: #{tpu_custom_call.1} parent=5 // pred_fallthru
        _
      %p1525 = scmp.le.s32.totalorder 2, %s24
      // Predicated region
      $region73: #{tpu_custom_call.1} parent=5 // pred_check
        %p1526 = pneg %p1525
      $region74: #{tpu_custom_call.1} parent=5 // pred_check_branch
        %1528 = sbr.rel (%p1526) target = $region76
      $region75: #{tpu_custom_call.1} parent=5 // pred_region
        %s1529 = ssub.s32 %s24, 2
        // Predicated region
        $region77: #{tpu_custom_call.1} parent=75 // pred_check
          %p1530 = pneg %p163
        $region78: #{tpu_custom_call.1} parent=75 // pred_check_branch
          %1532 = sbr.rel (%p1530) target = $region80
        $region79: #{tpu_custom_call.1} parent=75 // pred_region
          %s1533 = sand.u32 %s148, 1
          %s1534 = scalar_lea.sflag [#allocation6], %s1533
          %s1535 = sand.u32 %s148, 1
          %s1536 = smul.addr %s1535, 128
          %s1537 = scalar_lea.vmem [#allocation13], %s1536
          %1539 = dma.done %s1534, 2048
        $region80: #{tpu_custom_call.1} parent=75 // pred_fallthru
          _
        // Predicated region
        $region81: #{tpu_custom_call.1} parent=75 // pred_check
          %p1540 = pneg %p189
        $region82: #{tpu_custom_call.1} parent=75 // pred_check_branch
          %1542 = sbr.rel (%p1540) target = $region84
        $region83: #{tpu_custom_call.1} parent=75 // pred_region
          %s1543 = sand.u32 %s174, 1
          %s1544 = scalar_lea.sflag [#allocation15], %s1543
          %s1545 = sand.u32 %s174, 1
          %s1546 = smul.addr %s1545, 128
          %s1547 = scalar_lea.vmem [#allocation14], %s1546
          %1549 = dma.done %s1544, 2048
        $region84: #{tpu_custom_call.1} parent=75 // pred_fallthru
          _
      $region76: #{tpu_custom_call.1} parent=5 // pred_fallthru
        _
    $region6: #{tpu_custom_call.1} parent=1 // loop_footer
      %s28 = sadd.s32 1, %s24
    $region7: #{tpu_custom_call.1} parent=1 // loop_footer_branch
      %23 = sbr.rel target = $region3
    $region8: #{tpu_custom_call.1} parent=1 // loop_exit
      _
    %1550 = vsyncpa [#allocation5], 1
    %s1551 = scalar_lea.sflag [#allocation5], 1
    %1552 = vsyncpa %s1551, 1
    %1553 = vsyncpa [#allocation8], 1
    %s1554 = scalar_lea.sflag [#allocation8], 1
    %1555 = vsyncpa %s1554, 1
    %1556 = vsyncpa [#allocation11], 1
    %1557 = vsyncpa [#allocation6], 1
    %s1558 = scalar_lea.sflag [#allocation6], 1
    %1559 = vsyncpa %s1558, 1
    %1560 = vsyncpa [#allocation15], 1
    %s1561 = scalar_lea.sflag [#allocation15], 1
    %1562 = vsyncpa %s1561, 1

</llo_original>
